<compile_context>
chip_gen: v7x
topology: tpu7x:2x2x1
jax: 0.10.0
libtpu: 0.0.40
codegen_flags: <defaults>
</compile_context>

<pallas_src>
import functools

import jax
import jax.numpy as jnp
from jax.experimental import pallas as pl
from jax.experimental.pallas import tpu as pltpu


def _relu6(x):
    return jnp.minimum(jnp.maximum(x, 0.0), 6.0)


def _round_up(x, m):
    return ((x + m - 1) // m) * m


def mbconv_kernel(x_ref, mid_ref, proj_ref, out_ref, *,
                  kernel, pad, w_pad, cin, cin_p, margin, s_out, cout_p,
                  use_residual, expand_on_vpu):
    """One image per grid step.  All refs 2-D; lanes = flattened padded spatial.

    x_ref    : (Cin_p, S_blk)  rows [0,Cin) = image channels, row Cin = interior
               indicator (1 on real pixels, 0 on pad ring / margins), rest zero.
               Image data lives at lanes [margin, margin + H_pad*W_pad).
    mid_ref  : (Cmid, Cin_p + K*K + 1) = [expand W (BN folded, bias in the
               indicator column) | depthwise taps (BN folded) | depthwise bias]
    proj_ref : (Cout_p, Cmid + 1)      = [project W (BN folded) | bias]
    out_ref  : (Cout_p, S_out)         lane/sublane-dense store; the wrapper
               extracts interior / strided positions.
    """
    cmid = mid_ref.shape[0]
    kk = kernel * kernel
    f32 = jnp.float32

    x = x_ref[...]                                   # (Cin_p, S_blk)
    mid = mid_ref[...]
    w_e = mid[:, :cin_p]                             # (Cmid, Cin_p)
    wd = mid[:, cin_p:cin_p + kk]                    # (Cmid, K*K)
    db = mid[:, cin_p + kk:cin_p + kk + 1]           # (Cmid, 1)

    # ---- expand 1x1 (BN folded; bias rides on the indicator row) ----------
    if expand_on_vpu:
        # Tiny Cin underfills the MXU; do Cin+1 broadcast FMAs on the VPU.
        t = w_e[:, 0:1] * x[0:1, :]
        for k in range(1, cin + 1):
            t = t + w_e[:, k:k + 1] * x[k:k + 1, :]
    else:
        t = jnp.dot(w_e, x, preferred_element_type=f32)
    t = _relu6(t)                                    # (Cmid, S_blk); 0 on pads

    # ---- depthwise KxK: lane-shifted windows, width S_out (128-multiple) ---
    acc = None
    idx = 0
    for kh in range(kernel):
        for kw in range(kernel):
            off = (kh - pad) * w_pad + (kw - pad)
            start = margin + off
            win = jax.lax.slice(t, (0, start), (cmid, start + s_out))
            term = win * wd[:, idx:idx + 1]          # per-channel tap weight
            acc = term if acc is None else acc + term
            idx += 1
    acc = _relu6(acc + db)                           # (Cmid, S_out)

    # ---- project 1x1 (BN folded) + bias ------------------------------------
    wp = proj_ref[:, :cmid]                          # (Cout_p, Cmid)
    pb = proj_ref[:, cmid:cmid + 1]                  # (Cout_p, 1)
    out = jnp.dot(wp, acc, preferred_element_type=f32) + pb

    if use_residual:
        # margin is a multiple of 128 -> lane-aligned window, no realign.
        out = out + jax.lax.slice(x, (0, margin), (cout_p, margin + s_out))

    out_ref[...] = out.astype(out_ref.dtype)


def mbconv_v2(x_nchw, params, *, kernel, stride, use_residual):
    """NCHW in -> NCHW out (inference-mode BatchNorm folded into the weights)."""
    we, es, eb, wd, ds, db, wp, ps, pb = params
    N, Cin, H, W = x_nchw.shape
    Cmid = we.shape[1]
    Cout = wp.shape[1]
    pad = (kernel - 1) // 2
    H_pad, W_pad = H + 2 * pad, W + 2 * pad
    HW_pad = H_pad * W_pad
    Hout = (H + 2 * pad - kernel) // stride + 1
    Wout = (W + 2 * pad - kernel) // stride + 1

    if use_residual and not (stride == 1 and Cin == Cout):
        raise ValueError("use_residual requires stride == 1 and Cin == Cout")

    # Lane / sublane geometry: everything 128-lane and 8-sublane dense.
    Cin_p = _round_up(Cin + 1, 8)        # +1 row for the interior indicator
    Cout_p = _round_up(Cout, 8)
    max_off = pad * (W_pad + 1)          # largest depthwise tap lane shift
    margin = _round_up(max(max_off, 1), 128)
    S_out = _round_up(HW_pad, 128)       # stored output width per image
    S_blk = S_out + 2 * margin           # working width per image
    f32 = jnp.float32
    expand_on_vpu = Cin <= 16            # MXU is pure latency at tiny Cin

    # ---- input relayout: (Cin_p, N*S_blk), channels on sublanes ------------
    x_t = jnp.transpose(x_nchw.astype(f32), (1, 0, 2, 3))          # (Cin,N,H,W)
    ind = jnp.ones((1, N, H, W), f32)                               # indicator
    zer = jnp.zeros((Cin_p - Cin - 1, N, H, W), f32)
    x_aug = jnp.concatenate([x_t, ind, zer], axis=0)                # (Cin_p,..)
    x_aug = jnp.pad(x_aug, ((0, 0), (0, 0), (pad, pad), (pad, pad)))
    x_aug = x_aug.reshape(Cin_p, N, HW_pad)
    x_cf = jnp.pad(x_aug, ((0, 0), (0, 0),
                           (margin, S_blk - margin - HW_pad)))
    x_cf = x_cf.reshape(Cin_p, N * S_blk)

    # ---- fold BN scales into conv weights; pack small operands -------------
    weT = (we * es).T.astype(f32)                                   # (Cmid,Cin)
    weT = jnp.pad(weT, ((0, 0), (0, Cin_p - Cin)))
    weT = weT.at[:, Cin].set(eb.reshape(Cmid).astype(f32))          # bias col
    wd_eff = (wd * ds[0]).reshape(kernel * kernel, Cmid).T.astype(f32)
    db_c = db.reshape(Cmid, 1).astype(f32)
    mid_params = jnp.concatenate([weT, wd_eff, db_c], axis=1)       # (Cmid, .)

    wpT = (wp * ps).T.astype(f32)                                   # (Cout,Cmid)
    pb_c = pb.reshape(Cout, 1).astype(f32)
    proj_params = jnp.pad(jnp.concatenate([wpT, pb_c], axis=1),
                          ((0, Cout_p - Cout), (0, 0)))             # (Cout_p,.)

    kfn = functools.partial(
        mbconv_kernel, kernel=kernel, pad=pad, w_pad=W_pad, cin=Cin,
        cin_p=Cin_p, margin=margin, s_out=S_out, cout_p=Cout_p,
        use_residual=use_residual, expand_on_vpu=expand_on_vpu)

    mid_w = Cin_p + kernel * kernel + 1
    out_flat = pl.pallas_call(
        kfn,
        out_shape=jax.ShapeDtypeStruct((Cout_p, N * S_out), f32),
        grid=(N,),                       # one image per step; self-contained
        in_specs=[
            pl.BlockSpec((Cin_p, S_blk), lambda i: (0, i)),
            pl.BlockSpec((Cmid, mid_w), lambda i: (0, 0)),
            pl.BlockSpec((Cout_p, Cmid + 1), lambda i: (0, 0)),
        ],
        out_specs=pl.BlockSpec((Cout_p, S_out), lambda i: (0, i)),
        compiler_params=pltpu.CompilerParams(
            dimension_semantics=("parallel",)),
    )(x_cf, mid_params, proj_params)

    # ---- interior / strided selection + back to NCHW (outside the kernel) --
    out4 = out_flat.reshape(Cout_p, N, S_out)[:Cout, :, :HW_pad]
    out4 = out4.reshape(Cout, N, H_pad, W_pad)
    out4 = out4[:, :,
                pad: pad + (Hout - 1) * stride + 1: stride,
                pad: pad + (Wout - 1) * stride + 1: stride]
    return jnp.transpose(out4, (1, 0, 2, 3)).astype(x_nchw.dtype)


def mbconv_ref(x_nchw, params, *, kernel, stride, use_residual):
    """Pure-JAX reference (lax.conv) for correctness checking."""
    x = jnp.transpose(x_nchw, (0, 2, 3, 1))
    we, es, eb, wd, ds, db, wp, ps, pb = params
    Cmid = we.shape[1]
    pad = (kernel - 1) // 2

    t = jnp.einsum('nhwc,cd->nhwd', x, we)
    t = _relu6(t * es[0] + eb[0])

    dw = wd[:, :, None, :]                             # (K, K, 1, Cmid)  HWIO
    d = jax.lax.conv_general_dilated(
        t, dw, window_strides=(stride, stride),
        padding=((pad, pad), (pad, pad)),
        dimension_numbers=('NHWC', 'HWIO', 'NHWC'),
        feature_group_count=Cmid)
    d = _relu6(d * ds[0] + db[0])

    o = jnp.einsum('nhwc,cd->nhwd', d, wp)
    o = o * ps[0] + pb[0]
    if use_residual:
        o = o + x
    return jnp.transpose(o, (0, 3, 1, 2))


def init_params(key, Cin, Cmid, Cout, kernel, eps=1e-5):
    keys = jax.random.split(key, 15)
    we = jax.random.normal(keys[0], (Cin, Cmid), jnp.float32) / jnp.sqrt(Cin)
    wd = jax.random.normal(keys[1], (kernel, kernel, Cmid), jnp.float32) / kernel
    wp = jax.random.normal(keys[2], (Cmid, Cout), jnp.float32) / jnp.sqrt(Cmid)

    def bn(kg, kb, km, kv, C):
        gamma = 1.0 + 0.1 * jax.random.normal(kg, (C,), jnp.float32)
        beta = 0.1 * jax.random.normal(kb, (C,), jnp.float32)
        mean = 0.1 * jax.random.normal(km, (C,), jnp.float32)
        var = jax.random.uniform(kv, (C,), jnp.float32, minval=0.5, maxval=1.5)
        scale = gamma / jnp.sqrt(var + eps)
        bias = beta - mean * scale
        return scale.reshape(1, C), bias.reshape(1, C)

    es, eb = bn(keys[3], keys[4], keys[5], keys[6], Cmid)
    ds, db = bn(keys[7], keys[8], keys[9], keys[10], Cmid)
    ps, pb = bn(keys[11], keys[12], keys[13], keys[14], Cout)
    return (we, es, eb, wd, ds, db, wp, ps, pb)


if __name__ == "__main__":
    # MBConv_V2(kernel=3, in_channels=4, filters=4, strides=1, expand_ratio=6)
    N, Cin, H, W = 2, 4, 16, 16
    kernel, filters, strides, expand_ratio = 3, 4, 1, 6
    Cmid = Cin * expand_ratio
    use_residual = (Cin == filters) and (strides == 1)

    root = jax.random.PRNGKey(0)
    kx, kp = jax.random.split(root)
    x = jax.random.normal(kx, (N, Cin, H, W), jnp.float32)
    params = init_params(kp, Cin, Cmid, filters, kernel)

    out = mbconv_v2(x, params, kernel=kernel, stride=strides,
                    use_residual=use_residual)
    out = jax.block_until_ready(out)

    ref = mbconv_ref(x, params, kernel=kernel, stride=strides,
                     use_residual=use_residual)
    ref = jax.block_until_ready(ref)

    assert out.shape == (N, filters, H, W), out.shape
    assert jnp.allclose(out, ref, rtol=1e-4, atol=1e-4), \
        float(jnp.max(jnp.abs(out - ref)))
    print("KERNEL_OK")
</pallas_src>

<mosaic_0001>
module attributes {stable_mosaic.version = 11 : i64} {
  func.func @mbconv_kernel(%arg0: i32, %arg1: memref<8x640xf32, #tpu.memory_space<vmem>>, %arg2: memref<24x18xf32, #tpu.memory_space<vmem>>, %arg3: memref<8x25xf32, #tpu.memory_space<vmem>>, %arg4: memref<8x384xf32, #tpu.memory_space<vmem>>) attributes {dimension_semantics = [#tpu.dimension_semantics<parallel>], iteration_bounds = array<i64: 2>, scalar_prefetch = 0 : i64, scratch_operands = 0 : i64, tpu.core_type = #tpu.core_type<tc>, window_params = [{transform_indices = @transform_0, window_bounds = array<i64: 8, 640>}, {pipeline_mode = #tpu.pipeline_mode<synchronous>, transform_indices = @transform_1, window_bounds = array<i64: 24, 18>}, {pipeline_mode = #tpu.pipeline_mode<synchronous>, transform_indices = @transform_2, window_bounds = array<i64: 8, 25>}, {transform_indices = @transform_3, window_bounds = array<i64: 8, 384>}]} {
    %c0 = arith.constant 0 : index
    %c0_0 = arith.constant 0 : index
    %0 = vector.load %arg1[%c0, %c0_0] : memref<8x640xf32, #tpu.memory_space<vmem>>, vector<8x640xf32>
    %c0_1 = arith.constant 0 : index
    %c0_2 = arith.constant 0 : index
    %1 = vector.load %arg2[%c0_1, %c0_2] : memref<24x18xf32, #tpu.memory_space<vmem>>, vector<24x18xf32>
    %2 = vector.extract_strided_slice %1 {offsets = [0, 0], sizes = [24, 8], strides = [1, 1]} : vector<24x18xf32> to vector<24x8xf32>
    %3 = vector.extract_strided_slice %1 {offsets = [0, 8], sizes = [24, 9], strides = [1, 1]} : vector<24x18xf32> to vector<24x9xf32>
    %4 = vector.extract_strided_slice %1 {offsets = [0, 17], sizes = [24, 1], strides = [1, 1]} : vector<24x18xf32> to vector<24x1xf32>
    %5 = vector.extract_strided_slice %2 {offsets = [0, 0], sizes = [24, 1], strides = [1, 1]} : vector<24x8xf32> to vector<24x1xf32>
    %6 = vector.extract_strided_slice %0 {offsets = [0, 0], sizes = [1, 640], strides = [1, 1]} : vector<8x640xf32> to vector<1x640xf32>
    %7 = vector.broadcast %5 : vector<24x1xf32> to vector<24x640xf32>
    %8 = vector.broadcast %6 : vector<1x640xf32> to vector<24x640xf32>
    %9 = arith.mulf %7, %8 : vector<24x640xf32>
    %10 = vector.extract_strided_slice %2 {offsets = [0, 1], sizes = [24, 1], strides = [1, 1]} : vector<24x8xf32> to vector<24x1xf32>
    %11 = vector.extract_strided_slice %0 {offsets = [1, 0], sizes = [1, 640], strides = [1, 1]} : vector<8x640xf32> to vector<1x640xf32>
    %12 = vector.broadcast %10 : vector<24x1xf32> to vector<24x640xf32>
    %13 = vector.broadcast %11 : vector<1x640xf32> to vector<24x640xf32>
    %14 = arith.mulf %12, %13 : vector<24x640xf32>
    %15 = arith.addf %9, %14 : vector<24x640xf32>
    %16 = vector.extract_strided_slice %2 {offsets = [0, 2], sizes = [24, 1], strides = [1, 1]} : vector<24x8xf32> to vector<24x1xf32>
    %17 = vector.extract_strided_slice %0 {offsets = [2, 0], sizes = [1, 640], strides = [1, 1]} : vector<8x640xf32> to vector<1x640xf32>
    %18 = vector.broadcast %16 : vector<24x1xf32> to vector<24x640xf32>
    %19 = vector.broadcast %17 : vector<1x640xf32> to vector<24x640xf32>
    %20 = arith.mulf %18, %19 : vector<24x640xf32>
    %21 = arith.addf %15, %20 : vector<24x640xf32>
    %22 = vector.extract_strided_slice %2 {offsets = [0, 3], sizes = [24, 1], strides = [1, 1]} : vector<24x8xf32> to vector<24x1xf32>
    %23 = vector.extract_strided_slice %0 {offsets = [3, 0], sizes = [1, 640], strides = [1, 1]} : vector<8x640xf32> to vector<1x640xf32>
    %24 = vector.broadcast %22 : vector<24x1xf32> to vector<24x640xf32>
    %25 = vector.broadcast %23 : vector<1x640xf32> to vector<24x640xf32>
    %26 = arith.mulf %24, %25 : vector<24x640xf32>
    %27 = arith.addf %21, %26 : vector<24x640xf32>
    %28 = vector.extract_strided_slice %2 {offsets = [0, 4], sizes = [24, 1], strides = [1, 1]} : vector<24x8xf32> to vector<24x1xf32>
    %29 = vector.extract_strided_slice %0 {offsets = [4, 0], sizes = [1, 640], strides = [1, 1]} : vector<8x640xf32> to vector<1x640xf32>
    %30 = vector.broadcast %28 : vector<24x1xf32> to vector<24x640xf32>
    %31 = vector.broadcast %29 : vector<1x640xf32> to vector<24x640xf32>
    %32 = arith.mulf %30, %31 : vector<24x640xf32>
    %33 = arith.addf %27, %32 : vector<24x640xf32>
    %cst = arith.constant 0.000000e+00 : f32
    %34 = vector.broadcast %cst : f32 to vector<24x640xf32>
    %35 = arith.maximumf %33, %34 : vector<24x640xf32>
    %cst_3 = arith.constant 6.000000e+00 : f32
    %36 = vector.broadcast %cst_3 : f32 to vector<24x640xf32>
    %37 = arith.minimumf %35, %36 : vector<24x640xf32>
    %38 = vector.extract_strided_slice %37 {offsets = [0, 109], sizes = [24, 384], strides = [1, 1]} : vector<24x640xf32> to vector<24x384xf32>
    %39 = vector.extract_strided_slice %3 {offsets = [0, 0], sizes = [24, 1], strides = [1, 1]} : vector<24x9xf32> to vector<24x1xf32>
    %40 = vector.broadcast %39 : vector<24x1xf32> to vector<24x384xf32>
    %41 = arith.mulf %38, %40 : vector<24x384xf32>
    %42 = vector.extract_strided_slice %37 {offsets = [0, 110], sizes = [24, 384], strides = [1, 1]} : vector<24x640xf32> to vector<24x384xf32>
    %43 = vector.extract_strided_slice %3 {offsets = [0, 1], sizes = [24, 1], strides = [1, 1]} : vector<24x9xf32> to vector<24x1xf32>
    %44 = vector.broadcast %43 : vector<24x1xf32> to vector<24x384xf32>
    %45 = arith.mulf %42, %44 : vector<24x384xf32>
    %46 = arith.addf %41, %45 : vector<24x384xf32>
    %47 = vector.extract_strided_slice %37 {offsets = [0, 111], sizes = [24, 384], strides = [1, 1]} : vector<24x640xf32> to vector<24x384xf32>
    %48 = vector.extract_strided_slice %3 {offsets = [0, 2], sizes = [24, 1], strides = [1, 1]} : vector<24x9xf32> to vector<24x1xf32>
    %49 = vector.broadcast %48 : vector<24x1xf32> to vector<24x384xf32>
    %50 = arith.mulf %47, %49 : vector<24x384xf32>
    %51 = arith.addf %46, %50 : vector<24x384xf32>
    %52 = vector.extract_strided_slice %37 {offsets = [0, 127], sizes = [24, 384], strides = [1, 1]} : vector<24x640xf32> to vector<24x384xf32>
    %53 = vector.extract_strided_slice %3 {offsets = [0, 3], sizes = [24, 1], strides = [1, 1]} : vector<24x9xf32> to vector<24x1xf32>
    %54 = vector.broadcast %53 : vector<24x1xf32> to vector<24x384xf32>
    %55 = arith.mulf %52, %54 : vector<24x384xf32>
    %56 = arith.addf %51, %55 : vector<24x384xf32>
    %57 = vector.extract_strided_slice %37 {offsets = [0, 128], sizes = [24, 384], strides = [1, 1]} : vector<24x640xf32> to vector<24x384xf32>
    %58 = vector.extract_strided_slice %3 {offsets = [0, 4], sizes = [24, 1], strides = [1, 1]} : vector<24x9xf32> to vector<24x1xf32>
    %59 = vector.broadcast %58 : vector<24x1xf32> to vector<24x384xf32>
    %60 = arith.mulf %57, %59 : vector<24x384xf32>
    %61 = arith.addf %56, %60 : vector<24x384xf32>
    %62 = vector.extract_strided_slice %37 {offsets = [0, 129], sizes = [24, 384], strides = [1, 1]} : vector<24x640xf32> to vector<24x384xf32>
    %63 = vector.extract_strided_slice %3 {offsets = [0, 5], sizes = [24, 1], strides = [1, 1]} : vector<24x9xf32> to vector<24x1xf32>
    %64 = vector.broadcast %63 : vector<24x1xf32> to vector<24x384xf32>
    %65 = arith.mulf %62, %64 : vector<24x384xf32>
    %66 = arith.addf %61, %65 : vector<24x384xf32>
    %67 = vector.extract_strided_slice %37 {offsets = [0, 145], sizes = [24, 384], strides = [1, 1]} : vector<24x640xf32> to vector<24x384xf32>
    %68 = vector.extract_strided_slice %3 {offsets = [0, 6], sizes = [24, 1], strides = [1, 1]} : vector<24x9xf32> to vector<24x1xf32>
    %69 = vector.broadcast %68 : vector<24x1xf32> to vector<24x384xf32>
    %70 = arith.mulf %67, %69 : vector<24x384xf32>
    %71 = arith.addf %66, %70 : vector<24x384xf32>
    %72 = vector.extract_strided_slice %37 {offsets = [0, 146], sizes = [24, 384], strides = [1, 1]} : vector<24x640xf32> to vector<24x384xf32>
    %73 = vector.extract_strided_slice %3 {offsets = [0, 7], sizes = [24, 1], strides = [1, 1]} : vector<24x9xf32> to vector<24x1xf32>
    %74 = vector.broadcast %73 : vector<24x1xf32> to vector<24x384xf32>
    %75 = arith.mulf %72, %74 : vector<24x384xf32>
    %76 = arith.addf %71, %75 : vector<24x384xf32>
    %77 = vector.extract_strided_slice %37 {offsets = [0, 147], sizes = [24, 384], strides = [1, 1]} : vector<24x640xf32> to vector<24x384xf32>
    %78 = vector.extract_strided_slice %3 {offsets = [0, 8], sizes = [24, 1], strides = [1, 1]} : vector<24x9xf32> to vector<24x1xf32>
    %79 = vector.broadcast %78 : vector<24x1xf32> to vector<24x384xf32>
    %80 = arith.mulf %77, %79 : vector<24x384xf32>
    %81 = arith.addf %76, %80 : vector<24x384xf32>
    %82 = vector.broadcast %4 : vector<24x1xf32> to vector<24x384xf32>
    %83 = arith.addf %81, %82 : vector<24x384xf32>
    %cst_4 = arith.constant 0.000000e+00 : f32
    %84 = vector.broadcast %cst_4 : f32 to vector<24x384xf32>
    %85 = arith.maximumf %83, %84 : vector<24x384xf32>
    %cst_5 = arith.constant 6.000000e+00 : f32
    %86 = vector.broadcast %cst_5 : f32 to vector<24x384xf32>
    %87 = arith.minimumf %85, %86 : vector<24x384xf32>
    %c0_6 = arith.constant 0 : index
    %c0_7 = arith.constant 0 : index
    %88 = vector.load %arg3[%c0_6, %c0_7] : memref<8x25xf32, #tpu.memory_space<vmem>>, vector<8x24xf32>
    %c0_8 = arith.constant 0 : index
    %c24 = arith.constant 24 : index
    %89 = vector.load %arg3[%c0_8, %c24] : memref<8x25xf32, #tpu.memory_space<vmem>>, vector<8x1xf32>
    %cst_9 = arith.constant dense<0.000000e+00> : vector<8x384xf32>
    %90 = tpu.matmul %88, %87, %cst_9 {dimension_numbers = #tpu.dot_dimension_numbers<[1], [0], [0], [1], [0, 0, 1, 1], [], []>} : vector<8x24xf32>, vector<24x384xf32>, vector<8x384xf32> -> vector<8x384xf32>
    %91 = vector.broadcast %89 : vector<8x1xf32> to vector<8x384xf32>
    %92 = arith.addf %90, %91 : vector<8x384xf32>
    %93 = vector.extract_strided_slice %0 {offsets = [0, 128], sizes = [8, 384], strides = [1, 1]} : vector<8x640xf32> to vector<8x384xf32>
    %94 = arith.addf %92, %93 : vector<8x384xf32>
    %c0_10 = arith.constant 0 : index
    %c0_11 = arith.constant 0 : index
    %95 = vector.load %arg4[%c0_10, %c0_11] : memref<8x384xf32, #tpu.memory_space<vmem>>, vector<8x384xf32>
    tpu.vector_store %arg4[%c0_10, %c0_11], %94 {strides = array<i32>} : memref<8x384xf32, #tpu.memory_space<vmem>>, vector<8x384xf32>,
    return
  }
  func.func @transform_0(%arg0: i32) -> (i32, i32) {
    %c0_i32 = arith.constant 0 : i32
    %c0_i32_0 = arith.constant 0 : i32
    return %c0_i32, %arg0 : i32, i32
  }
  func.func @transform_1(%arg0: i32) -> (i32, i32) {
    %c0_i32 = arith.constant 0 : i32
    %c0_i32_0 = arith.constant 0 : i32
    %c0_i32_1 = arith.constant 0 : i32
    return %c0_i32, %c0_i32_0 : i32, i32
  }
  func.func @transform_2(%arg0: i32) -> (i32, i32) {
    %c0_i32 = arith.constant 0 : i32
    %c0_i32_0 = arith.constant 0 : i32
    %c0_i32_1 = arith.constant 0 : i32
    return %c0_i32, %c0_i32_0 : i32, i32
  }
  func.func @transform_3(%arg0: i32) -> (i32, i32) {
    %c0_i32 = arith.constant 0 : i32
    %c0_i32_0 = arith.constant 0 : i32
    return %c0_i32, %arg0 : i32, i32
  }
}

</mosaic_0001>

<llo_original>
// kernel: tpu_custom_call.1
$region0: #{tpu_custom_call.1}
  #allocation0 [shape = 'u32[]', space=smem, size = 0x4, offset = 0x4, fixed_abs, tag = 'smem constant byte address 0x4 - core index']
  #allocation1 [shape = 'u32[144,128]{1,0:T(1,128)}', space=vmem, size = 0x12000, scoped, tag = 'internal scratch']
  %s0 = inlined_call_operand.hbm [shape: f32[8,1280], index: 0, kind: input, shape index: {}]
  %s1 = inlined_call_operand.hbm [shape: f32[24,18], index: 1, kind: input, shape index: {}]
  %s2 = inlined_call_operand.hbm [shape: f32[8,25], index: 2, kind: input, shape index: {}]
  %s3 = inlined_call_operand.hbm [shape: f32[8,768], index: 3, kind: output, shape index: {}]
  %s4 = sld [smem:[#allocation0]]
  $region57: #{tpu_custom_call.1} parent=0
    _
  %s6 = ssub.s32 1, %s4
  %s7 = scalar_select 0, %s6, %s4
  $region1: #{tpu_custom_call.1} parent=0
    #allocation2 [shape = 'u8[40960]{0}', space=vmem, size = 0xa000, scoped, tag = 'input window, operand 0']
    #allocation3 [shape = 's32[2]{0}', space=sflag, size = 0x8, scoped, tag = 'scoped memory for tpu_custom_call.1']
    #allocation4 [shape = 's32[2]{0}', space=sflag, size = 0x8, scoped, tag = 'scoped memory for tpu_custom_call.1']
    #allocation5 [shape = 'u8[12288]{0}', space=vmem, size = 0x3000, scoped, tag = 'input window, operand 1, single buffered']
    #allocation6 [shape = 's32[1]{0}', space=sflag, size = 0x4, scoped, tag = 'scoped memory for tpu_custom_call.1']
    #allocation7 [shape = 'u8[4096]{0}', space=vmem, size = 0x1000, scoped, tag = 'input window, operand 2, single buffered']
    #allocation8 [shape = 'u8[24576]{0}', space=vmem, size = 0x6000, scoped, tag = 'output window, operand 0']
    %8 = vsyncpa [#allocation3], 0
    %s9 = scalar_lea.sflag [#allocation3], 1
    %10 = vsyncpa %s9, 0
    %11 = vsyncpa [#allocation6], 0
    %12 = vsyncpa [#allocation4], 0
    %s13 = scalar_lea.sflag [#allocation4], 1
    %14 = vsyncpa %s13, 0
    loop: start=0, step=1, limit=4
    $region2: #{tpu_custom_call.1} parent=1 // loop_pre_header
      _
    $region3: #{tpu_custom_call.1} parent=1 // loop_header
      %s16 = sphi 0, %s20
      %p17 = scmp.ge.s32.totalorder %s16, 4
      %s26 = sphi 0, %s28
      %s29 = sphi 0, %s26
      %s30 = sphi 0, %s29
      %s46 = sphi 0, %s30
      %s50 = sphi 0, %s50
      %s52 = sphi 0, %s50
      %s53 = sphi 0, %s52
      %s67 = sphi 0, %s53
      %s71 = sphi 0, %s71
      %s73 = sphi 0, %s71
      %s74 = sphi 0, %s73
      %s88 = sphi 0, %s74
      %s94 = sphi 0, %s96
      %s97 = sphi 0, %s94
      %s98 = sphi 0, %s97
      %s114 = sphi 0, %s98
    $region4: #{tpu_custom_call.1} parent=1 // loop_header_branch
      %19 = sbr.rel (%p17) target = $region8
    $region5: #{tpu_custom_call.1} parent=1 // loop_body
      %s21 = ssub.s32 %s16, 1
      %s22 = ssub.s32 %s16, 2
      %s23 = sadd.s32 %s16, 1
      %s24 = ssub.s32 %s16, %s23
      %p25 = scmp.eq.s32.totalorder %s24, 0
      %s27 = sadd.s32 %s26, 1
      %s28 = scalar_select %p25, %s26, %s27
      %p31 = pneg %p25
      %p32 = scmp.eq.s32.totalorder %s16, 1
      %p33 = por %p31, %p32
      %p34 = scmp.ne.s32.totalorder %s26, %s29
      %p35 = scmp.eq.s32.totalorder %s16, 0
      %p36 = por %p34, %p35
      %p37 = scmp.ne.s32.totalorder %s26, %s29
      %p38 = scmp.eq.s32.totalorder %s21, 1
      %p39 = por %p37, %p38
      %p40 = scmp.ne.s32.totalorder %s29, %s30
      %p41 = scmp.eq.s32.totalorder %s21, 0
      %p42 = por %p40, %p41
      %p43 = scmp.ne.s32.totalorder %s29, %s30
      %p44 = scmp.eq.s32.totalorder %s22, 1
      %p45 = por %p43, %p44
      %p47 = scmp.ne.s32.totalorder %s30, %s46
      %p48 = scmp.eq.s32.totalorder %s22, 0
      %p49 = por %p47, %p48
      %s51 = sadd.s32 %s50, 1
      %p54 = scmp.eq.s32.totalorder %s16, 1
      %p55 = scmp.ne.s32.totalorder %s50, %s52
      %p56 = scmp.eq.s32.totalorder %s16, 0
      %p57 = por %p55, %p56
      %p58 = scmp.ne.s32.totalorder %s50, %s52
      %p59 = scmp.eq.s32.totalorder %s21, 1
      %p60 = por %p58, %p59
      %p61 = scmp.ne.s32.totalorder %s52, %s53
      %p62 = scmp.eq.s32.totalorder %s21, 0
      %p63 = por %p61, %p62
      %p64 = scmp.ne.s32.totalorder %s52, %s53
      %p65 = scmp.eq.s32.totalorder %s22, 1
      %p66 = por %p64, %p65
      %p68 = scmp.ne.s32.totalorder %s53, %s67
      %p69 = scmp.eq.s32.totalorder %s22, 0
      %p70 = por %p68, %p69
      %s72 = sadd.s32 %s71, 1
      %p75 = scmp.eq.s32.totalorder %s16, 1
      %p76 = scmp.ne.s32.totalorder %s71, %s73
      %p77 = scmp.eq.s32.totalorder %s16, 0
      %p78 = por %p76, %p77
      %p79 = scmp.ne.s32.totalorder %s71, %s73
      %p80 = scmp.eq.s32.totalorder %s21, 1
      %p81 = por %p79, %p80
      %p82 = scmp.ne.s32.totalorder %s73, %s74
      %p83 = scmp.eq.s32.totalorder %s21, 0
      %p84 = por %p82, %p83
      %p85 = scmp.ne.s32.totalorder %s73, %s74
      %p86 = scmp.eq.s32.totalorder %s22, 1
      %p87 = por %p85, %p86
      %p89 = scmp.ne.s32.totalorder %s74, %s88
      %p90 = scmp.eq.s32.totalorder %s22, 0
      %p91 = por %p89, %p90
      %s92 = ssub.s32 %s16, %s23
      %p93 = scmp.eq.s32.totalorder %s92, 0
      %s95 = sadd.s32 %s94, 1
      %s96 = scalar_select %p93, %s94, %s95
      %p99 = pneg %p93
      %p100 = scmp.eq.s32.totalorder %s16, 1
      %p101 = por %p99, %p100
      %p102 = scmp.ne.s32.totalorder %s94, %s97
      %p103 = scmp.eq.s32.totalorder %s16, 0
      %p104 = por %p102, %p103
      %p105 = scmp.ne.s32.totalorder %s94, %s97
      %p106 = scmp.eq.s32.totalorder %s21, 1
      %p107 = por %p105, %p106
      %p108 = scmp.ne.s32.totalorder %s97, %s98
      %p109 = scmp.eq.s32.totalorder %s21, 0
      %p110 = por %p108, %p109
      %p111 = scmp.ne.s32.totalorder %s97, %s98
      %p112 = scmp.eq.s32.totalorder %s22, 1
      %p113 = por %p111, %p112
      %p115 = scmp.ne.s32.totalorder %s98, %s114
      %p116 = scmp.eq.s32.totalorder %s22, 0
      %p117 = por %p115, %p116
      %p118 = scmp.le.s32.totalorder 1, %s16
      %p119 = scmp.lt.s32.totalorder %s16, 3
      %p120 = pnand %p118, %p119
      %p121 = pneg %p120
      // Predicated region
      $region9: #{tpu_custom_call.1} parent=5 // pred_check
        _
      $region10: #{tpu_custom_call.1} parent=5 // pred_check_branch
        %123 = sbr.rel (%p120) target = $region12
      $region11: #{tpu_custom_call.1} parent=5 // pred_region
        %s124 = ssub.s32 %s16, 1
        // Predicated region
        $region13: #{tpu_custom_call.1} parent=11 // pred_check
          %p125 = pneg %p63
        $region14: #{tpu_custom_call.1} parent=11 // pred_check_branch
          %127 = sbr.rel (%p125) target = $region16
        $region15: #{tpu_custom_call.1} parent=11 // pred_region
          %s129 = ssub.s32 384, 384
          %130 = vsyncadd [#allocation6], %s129
          %s131 = sshll.u32 [#allocation5], 4
          %s132 = int_to_ptr.vmem [resolvable:$true] %s131
          %137 = dma.hbm_to_vmem [thread:$0]  %s1, 384, %s132, [#allocation6], 128, 128, 8
        $region16: #{tpu_custom_call.1} parent=11 // pred_fallthru
          _
        // Predicated region
        $region17: #{tpu_custom_call.1} parent=11 // pred_check
          %p138 = pneg %p84
        $region18: #{tpu_custom_call.1} parent=11 // pred_check_branch
          %140 = sbr.rel (%p138) target = $region20
        $region19: #{tpu_custom_call.1} parent=11 // pred_region
          %s142 = ssub.s32 128, 128
          %143 = vsyncadd [#allocation6], %s142
          %s145 = sshll.u32 [#allocation7], 4
          %s146 = int_to_ptr.vmem [resolvable:$true] %s145
          %148 = dma.hbm_to_vmem [thread:$0]  %s2, 128, %s146, [#allocation6]
        $region20: #{tpu_custom_call.1} parent=11 // pred_fallthru
          _
      $region12: #{tpu_custom_call.1} parent=5 // pred_fallthru
        _
      %p149 = scmp.lt.s32.totalorder %s16, 2
      // Predicated region
      $region21: #{tpu_custom_call.1} parent=5 // pred_check
        %p150 = pneg %p149
      $region22: #{tpu_custom_call.1} parent=5 // pred_check_branch
        %152 = sbr.rel (%p150) target = $region24
      $region23: #{tpu_custom_call.1} parent=5 // pred_region
        // Predicated region
        $region25: #{tpu_custom_call.1} parent=23 // pred_check
          %p153 = pneg %p36
        $region26: #{tpu_custom_call.1} parent=23 // pred_check_branch
          %155 = sbr.rel (%p153) target = $region28
        $region27: #{tpu_custom_call.1} parent=23 // pred_region
          %s156 = sand.u32 %s26, 1
          %s157 = scalar_lea.sflag [#allocation3], %s156
          %s158 = sand.u32 %s26, 1
          %s159 = smul.addr %s158, 40
          %s160 = scalar_lea.vmem [#allocation2], %s159
          %s161 = smul.u32 5, %s16
          %s163 = ssub.s32 640, 640
          %164 = vsyncadd %s157, %s163
          %s165 = smul.addr %s161, 128
          %s166 = scalar_lea.hbm %s0, %s165
          %s168 = sshll.u32 %s160, 4
          %s169 = int_to_ptr.vmem [resolvable:$true] %s168
          %171 = dma.hbm_to_vmem [thread:$0]  %s166, 640, %s169, %s157
        $region28: #{tpu_custom_call.1} parent=23 // pred_fallthru
          _
      $region24: #{tpu_custom_call.1} parent=5 // pred_fallthru
        _
      %p172 = scmp.le.s32.totalorder 1, %s16
      %p173 = scmp.lt.s32.totalorder %s16, 3
      %p174 = pnand %p172, %p173
      %p175 = pneg %p174
      // Predicated region
      $region29: #{tpu_custom_call.1} parent=5 // pred_check
        _
      $region30: #{tpu_custom_call.1} parent=5 // pred_check_branch
        %177 = sbr.rel (%p174) target = $region32
      $region31: #{tpu_custom_call.1} parent=5 // pred_region
        %s178 = ssub.s32 %s16, 1
        %s179 = sand.u32 %s29, 1
        %s180 = scalar_lea.sflag [#allocation3], %s179
        %s181 = sand.u32 %s29, 1
        %s182 = smul.addr %s181, 40
        %s183 = scalar_lea.vmem [#allocation2], %s182
        // Predicated region
        $region33: #{tpu_custom_call.1} parent=31 // pred_check
          %p184 = pneg %p42
        $region34: #{tpu_custom_call.1} parent=31 // pred_check_branch
          %186 = sbr.rel (%p184) target = $region36
        $region35: #{tpu_custom_call.1} parent=31 // pred_region
          %187 = dma.done %s180, 640
        $region36: #{tpu_custom_call.1} parent=31 // pred_fallthru
          _
        // Predicated region
        $region37: #{tpu_custom_call.1} parent=31 // pred_check
          %p188 = pneg %p63
        $region38: #{tpu_custom_call.1} parent=31 // pred_check_branch
          %190 = sbr.rel (%p188) target = $region40
        $region39: #{tpu_custom_call.1} parent=31 // pred_region
          %191 = dma.done [#allocation6], 384
        $region40: #{tpu_custom_call.1} parent=31 // pred_fallthru
          _
        // Predicated region
        $region41: #{tpu_custom_call.1} parent=31 // pred_check
          %p192 = pneg %p84
        $region42: #{tpu_custom_call.1} parent=31 // pred_check_branch
          %194 = sbr.rel (%p192) target = $region44
        $region43: #{tpu_custom_call.1} parent=31 // pred_region
          %195 = dma.done [#allocation6], 128
        $region44: #{tpu_custom_call.1} parent=31 // pred_fallthru
          _
        %s196 = sand.u32 %s29, 1
        %s197 = scalar_lea.sflag [#allocation3], %s196
        %s198 = sand.u32 %s29, 1
        %s199 = smul.addr %s198, 40
        %s200 = scalar_lea.vmem [#allocation2], %s199
        %p201 = pneg %p42
        %p202 = pneg %p39
        %p203 = pneg %p63
        %p204 = pneg %p60
        %p205 = pneg %p84
        %p206 = pneg %p81
        %p207 = pneg %p110
        %p208 = pneg %p107
        %s209 = sand.u32 %s97, 1
        %s210 = scalar_lea.sflag [#allocation4], %s209
        %s211 = sand.u32 %s97, 1
        %s212 = smul.addr %s211, 24
        %s213 = scalar_lea.vmem [#allocation8], %s212
        %s214 = smul.u32 5, %s21
        %s215 = smul.u32 3, %s21
        %v216 = vld [vmem:[%s183] sm:$0xff]
        %v217 = vld [vmem:[%s183 + $0x8] sm:$0xff]
        %v218 = vld [vmem:[%s183 + $0x10] sm:$0xff]
        %v219 = vld [vmem:[%s183 + $0x18] sm:$0xff]
        %v220 = vld [vmem:[%s183 + $0x20] sm:$0xff]
        %v221 = vld [vmem:[#allocation5] sm:$0xff]
        %v222 = vld [vmem:[#allocation5 + $0x8] sm:$0xff]
        %v223 = vld [vmem:[#allocation5 + $0x10] sm:$0xff]
        %225 = vset.pattern.permute.xlu0 0
        %226 = vperm.xlu0 %225, %v221
        %v227 = vpop.permute.xlu0 %226
        %230 = vset.pattern.permute.xlu0 0
        %231 = vperm.xlu0 %230, %v222
        %v232 = vpop.permute.xlu0 %231
        %235 = vset.pattern.permute.xlu0 0
        %236 = vperm.xlu0 %235, %v223
        %v237 = vpop.permute.xlu0 %236
        %v239 = vlaneseq
        %v240 = vshrl.u32 %v239, 7
        %v241 = vsub.s32 0, %v240
        %v242 = vrot.slane %v216, %v241
        %v243 = vlaneseq
        %v244 = vshrl.u32 %v243, 7
        %v245 = vsub.s32 0, %v244
        %v246 = vrot.slane %v217, %v245
        %v247 = vlaneseq
        %v248 = vshrl.u32 %v247, 7
        %v249 = vsub.s32 0, %v248
        %v250 = vrot.slane %v218, %v249
        %v251 = vlaneseq
        %v252 = vshrl.u32 %v251, 7
        %v253 = vsub.s32 0, %v252
        %v254 = vrot.slane %v219, %v253
        %v255 = vlaneseq
        %v256 = vshrl.u32 %v255, 7
        %v257 = vsub.s32 0, %v256
        %v258 = vrot.slane %v220, %v257
        %v259 = vmul.f32 %v227, %v242
        %v260 = vmul.f32 %v227, %v246
        %v261 = vmul.f32 %v227, %v250
        %v262 = vmul.f32 %v227, %v254
        %v263 = vmul.f32 %v227, %v258
        %v264 = vmul.f32 %v232, %v242
        %v265 = vmul.f32 %v232, %v246
        %v266 = vmul.f32 %v232, %v250
        %v267 = vmul.f32 %v232, %v254
        %v268 = vmul.f32 %v232, %v258
        %v269 = vmul.f32 %v237, %v242
        %v270 = vmul.f32 %v237, %v246
        %v271 = vmul.f32 %v237, %v250
        %v272 = vmul.f32 %v237, %v254
        %v273 = vmul.f32 %v237, %v258
        %274 = vset.pattern.permute.xlu0 1
        %275 = vperm.xlu0 %274, %v221
        %v276 = vpop.permute.xlu0 %275
        %278 = vset.pattern.permute.xlu0 1
        %279 = vperm.xlu0 %278, %v222
        %v280 = vpop.permute.xlu0 %279
        %282 = vset.pattern.permute.xlu0 1
        %283 = vperm.xlu0 %282, %v223
        %v284 = vpop.permute.xlu0 %283
        %v286 = vlaneseq
        %v287 = vshrl.u32 %v286, 7
        %v288 = vsub.s32 1, %v287
        %v289 = vrot.slane %v216, %v288
        %v290 = vlaneseq
        %v291 = vshrl.u32 %v290, 7
        %v292 = vsub.s32 1, %v291
        %v293 = vrot.slane %v217, %v292
        %v294 = vlaneseq
        %v295 = vshrl.u32 %v294, 7
        %v296 = vsub.s32 1, %v295
        %v297 = vrot.slane %v218, %v296
        %v298 = vlaneseq
        %v299 = vshrl.u32 %v298, 7
        %v300 = vsub.s32 1, %v299
        %v301 = vrot.slane %v219, %v300
        %v302 = vlaneseq
        %v303 = vshrl.u32 %v302, 7
        %v304 = vsub.s32 1, %v303
        %v305 = vrot.slane %v220, %v304
        %v306 = vmul.f32 %v276, %v289
        %v307 = vmul.f32 %v276, %v293
        %v308 = vmul.f32 %v276, %v297
        %v309 = vmul.f32 %v276, %v301
        %v310 = vmul.f32 %v276, %v305
        %v311 = vmul.f32 %v280, %v289
        %v312 = vmul.f32 %v280, %v293
        %v313 = vmul.f32 %v280, %v297
        %v314 = vmul.f32 %v280, %v301
        %v315 = vmul.f32 %v280, %v305
        %v316 = vmul.f32 %v284, %v289
        %v317 = vmul.f32 %v284, %v293
        %v318 = vmul.f32 %v284, %v297
        %v319 = vmul.f32 %v284, %v301
        %v320 = vmul.f32 %v284, %v305
        %v321 = vadd.f32 %v259, %v306
        %v322 = vadd.f32 %v260, %v307
        %v323 = vadd.f32 %v261, %v308
        %v324 = vadd.f32 %v262, %v309
        %v325 = vadd.f32 %v263, %v310
        %v326 = vadd.f32 %v264, %v311
        %v327 = vadd.f32 %v265, %v312
        %v328 = vadd.f32 %v266, %v313
        %v329 = vadd.f32 %v267, %v314
        %v330 = vadd.f32 %v268, %v315
        %v331 = vadd.f32 %v269, %v316
        %v332 = vadd.f32 %v270, %v317
        %v333 = vadd.f32 %v271, %v318
        %v334 = vadd.f32 %v272, %v319
        %v335 = vadd.f32 %v273, %v320
        %336 = vset.pattern.permute.xlu0 2
        %337 = vperm.xlu0 %336, %v221
        %v338 = vpop.permute.xlu0 %337
        %340 = vset.pattern.permute.xlu0 2
        %341 = vperm.xlu0 %340, %v222
        %v342 = vpop.permute.xlu0 %341
        %344 = vset.pattern.permute.xlu0 2
        %345 = vperm.xlu0 %344, %v223
        %v346 = vpop.permute.xlu0 %345
        %v348 = vlaneseq
        %v349 = vshrl.u32 %v348, 7
        %v350 = vsub.s32 2, %v349
        %v351 = vrot.slane %v216, %v350
        %v352 = vlaneseq
        %v353 = vshrl.u32 %v352, 7
        %v354 = vsub.s32 2, %v353
        %v355 = vrot.slane %v217, %v354
        %v356 = vlaneseq
        %v357 = vshrl.u32 %v356, 7
        %v358 = vsub.s32 2, %v357
        %v359 = vrot.slane %v218, %v358
        %v360 = vlaneseq
        %v361 = vshrl.u32 %v360, 7
        %v362 = vsub.s32 2, %v361
        %v363 = vrot.slane %v219, %v362
        %v364 = vlaneseq
        %v365 = vshrl.u32 %v364, 7
        %v366 = vsub.s32 2, %v365
        %v367 = vrot.slane %v220, %v366
        %v368 = vmul.f32 %v338, %v351
        %v369 = vmul.f32 %v338, %v355
        %v370 = vmul.f32 %v338, %v359
        %v371 = vmul.f32 %v338, %v363
        %v372 = vmul.f32 %v338, %v367
        %v373 = vmul.f32 %v342, %v351
        %v374 = vmul.f32 %v342, %v355
        %v375 = vmul.f32 %v342, %v359
        %v376 = vmul.f32 %v342, %v363
        %v377 = vmul.f32 %v342, %v367
        %v378 = vmul.f32 %v346, %v351
        %v379 = vmul.f32 %v346, %v355
        %v380 = vmul.f32 %v346, %v359
        %v381 = vmul.f32 %v346, %v363
        %v382 = vmul.f32 %v346, %v367
        %v383 = vadd.f32 %v321, %v368
        %v384 = vadd.f32 %v322, %v369
        %v385 = vadd.f32 %v323, %v370
        %v386 = vadd.f32 %v324, %v371
        %v387 = vadd.f32 %v325, %v372
        %v388 = vadd.f32 %v326, %v373
        %v389 = vadd.f32 %v327, %v374
        %v390 = vadd.f32 %v328, %v375
        %v391 = vadd.f32 %v329, %v376
        %v392 = vadd.f32 %v330, %v377
        %v393 = vadd.f32 %v331, %v378
        %v394 = vadd.f32 %v332, %v379
        %v395 = vadd.f32 %v333, %v380
        %v396 = vadd.f32 %v334, %v381
        %v397 = vadd.f32 %v335, %v382
        %398 = vset.pattern.permute.xlu0 3
        %399 = vperm.xlu0 %398, %v221
        %v400 = vpop.permute.xlu0 %399
        %402 = vset.pattern.permute.xlu0 3
        %403 = vperm.xlu0 %402, %v222
        %v404 = vpop.permute.xlu0 %403
        %406 = vset.pattern.permute.xlu0 3
        %407 = vperm.xlu0 %406, %v223
        %v408 = vpop.permute.xlu0 %407
        %v410 = vlaneseq
        %v411 = vshrl.u32 %v410, 7
        %v412 = vsub.s32 3, %v411
        %v413 = vrot.slane %v216, %v412
        %v414 = vlaneseq
        %v415 = vshrl.u32 %v414, 7
        %v416 = vsub.s32 3, %v415
        %v417 = vrot.slane %v217, %v416
        %v418 = vlaneseq
        %v419 = vshrl.u32 %v418, 7
        %v420 = vsub.s32 3, %v419
        %v421 = vrot.slane %v218, %v420
        %v422 = vlaneseq
        %v423 = vshrl.u32 %v422, 7
        %v424 = vsub.s32 3, %v423
        %v425 = vrot.slane %v219, %v424
        %v426 = vlaneseq
        %v427 = vshrl.u32 %v426, 7
        %v428 = vsub.s32 3, %v427
        %v429 = vrot.slane %v220, %v428
        %v430 = vmul.f32 %v400, %v413
        %v431 = vmul.f32 %v400, %v417
        %v432 = vmul.f32 %v400, %v421
        %v433 = vmul.f32 %v400, %v425
        %v434 = vmul.f32 %v400, %v429
        %v435 = vmul.f32 %v404, %v413
        %v436 = vmul.f32 %v404, %v417
        %v437 = vmul.f32 %v404, %v421
        %v438 = vmul.f32 %v404, %v425
        %v439 = vmul.f32 %v404, %v429
        %v440 = vmul.f32 %v408, %v413
        %v441 = vmul.f32 %v408, %v417
        %v442 = vmul.f32 %v408, %v421
        %v443 = vmul.f32 %v408, %v425
        %v444 = vmul.f32 %v408, %v429
        %v445 = vadd.f32 %v383, %v430
        %v446 = vadd.f32 %v384, %v431
        %v447 = vadd.f32 %v385, %v432
        %v448 = vadd.f32 %v386, %v433
        %v449 = vadd.f32 %v387, %v434
        %v450 = vadd.f32 %v388, %v435
        %v451 = vadd.f32 %v389, %v436
        %v452 = vadd.f32 %v390, %v437
        %v453 = vadd.f32 %v391, %v438
        %v454 = vadd.f32 %v392, %v439
        %v455 = vadd.f32 %v393, %v440
        %v456 = vadd.f32 %v394, %v441
        %v457 = vadd.f32 %v395, %v442
        %v458 = vadd.f32 %v396, %v443
        %v459 = vadd.f32 %v397, %v444
        %460 = vset.pattern.permute.xlu0 4
        %461 = vperm.xlu0 %460, %v221
        %v462 = vpop.permute.xlu0 %461
        %464 = vset.pattern.permute.xlu0 4
        %465 = vperm.xlu0 %464, %v222
        %v466 = vpop.permute.xlu0 %465
        %468 = vset.pattern.permute.xlu0 4
        %469 = vperm.xlu0 %468, %v223
        %v470 = vpop.permute.xlu0 %469
        %v472 = vlaneseq
        %v473 = vshrl.u32 %v472, 7
        %v474 = vsub.s32 4, %v473
        %v475 = vrot.slane %v216, %v474
        %v476 = vlaneseq
        %v477 = vshrl.u32 %v476, 7
        %v478 = vsub.s32 4, %v477
        %v479 = vrot.slane %v217, %v478
        %v480 = vlaneseq
        %v481 = vshrl.u32 %v480, 7
        %v482 = vsub.s32 4, %v481
        %v483 = vrot.slane %v218, %v482
        %v484 = vlaneseq
        %v485 = vshrl.u32 %v484, 7
        %v486 = vsub.s32 4, %v485
        %v487 = vrot.slane %v219, %v486
        %v488 = vlaneseq
        %v489 = vshrl.u32 %v488, 7
        %v490 = vsub.s32 4, %v489
        %v491 = vrot.slane %v220, %v490
        %v492 = vmul.f32 %v462, %v475
        %v493 = vmul.f32 %v462, %v479
        %v494 = vmul.f32 %v462, %v483
        %v495 = vmul.f32 %v462, %v487
        %v496 = vmul.f32 %v462, %v491
        %v497 = vmul.f32 %v466, %v475
        %v498 = vmul.f32 %v466, %v479
        %v499 = vmul.f32 %v466, %v483
        %v500 = vmul.f32 %v466, %v487
        %v501 = vmul.f32 %v466, %v491
        %v502 = vmul.f32 %v470, %v475
        %v503 = vmul.f32 %v470, %v479
        %v504 = vmul.f32 %v470, %v483
        %v505 = vmul.f32 %v470, %v487
        %v506 = vmul.f32 %v470, %v491
        %v507 = vadd.f32 %v445, %v492
        %v508 = vadd.f32 %v446, %v493
        %v509 = vadd.f32 %v447, %v494
        %v510 = vadd.f32 %v448, %v495
        %v511 = vadd.f32 %v449, %v496
        %v512 = vadd.f32 %v450, %v497
        %v513 = vadd.f32 %v451, %v498
        %v514 = vadd.f32 %v452, %v499
        %v515 = vadd.f32 %v453, %v500
        %v516 = vadd.f32 %v454, %v501
        %v517 = vadd.f32 %v455, %v502
        %v518 = vadd.f32 %v456, %v503
        %v519 = vadd.f32 %v457, %v504
        %v520 = vadd.f32 %v458, %v505
        %v521 = vadd.f32 %v459, %v506
        %v522 = vmax.f32 %v507, 0.0
        %v523 = vmax.f32 %v508, 0.0
        %v524 = vmax.f32 %v509, 0.0
        %v525 = vmax.f32 %v510, 0.0
        %v526 = vmax.f32 %v511, 0.0
        %v527 = vmax.f32 %v512, 0.0
        %v528 = vmax.f32 %v513, 0.0
        %v529 = vmax.f32 %v514, 0.0
        %v530 = vmax.f32 %v515, 0.0
        %v531 = vmax.f32 %v516, 0.0
        %v532 = vmax.f32 %v517, 0.0
        %v533 = vmax.f32 %v518, 0.0
        %v534 = vmax.f32 %v519, 0.0
        %v535 = vmax.f32 %v520, 0.0
        %v536 = vmax.f32 %v521, 0.0
        %v537 = vmin.f32 %v522, 6.0
        %v538 = vmin.f32 %v523, 6.0
        %v539 = vmin.f32 %v524, 6.0
        %v540 = vmin.f32 %v525, 6.0
        %v541 = vmin.f32 %v526, 6.0
        %v542 = vmin.f32 %v527, 6.0
        %v543 = vmin.f32 %v528, 6.0
        %v544 = vmin.f32 %v529, 6.0
        %v545 = vmin.f32 %v530, 6.0
        %v546 = vmin.f32 %v531, 6.0
        %v547 = vmin.f32 %v532, 6.0
        %v548 = vmin.f32 %v533, 6.0
        %v549 = vmin.f32 %v534, 6.0
        %v550 = vmin.f32 %v535, 6.0
        %v551 = vmin.f32 %v536, 6.0
        %552 = vset.pattern.permute.xlu0 8
        %553 = vperm.xlu0 %552, %v221
        %v554 = vpop.permute.xlu0 %553
        %556 = vset.pattern.permute.xlu0 8
        %557 = vperm.xlu0 %556, %v222
        %v558 = vpop.permute.xlu0 %557
        %560 = vset.pattern.permute.xlu0 8
        %561 = vperm.xlu0 %560, %v223
        %v562 = vpop.permute.xlu0 %561
        %v564 = vmul.f32 %v537, %v554
        %v565 = vmul.f32 %v538, %v554
        %v566 = vmul.f32 %v539, %v554
        %v567 = vmul.f32 %v540, %v554
        %v568 = vmul.f32 %v542, %v558
        %v569 = vmul.f32 %v543, %v558
        %v570 = vmul.f32 %v544, %v558
        %v571 = vmul.f32 %v545, %v558
        %v572 = vmul.f32 %v547, %v562
        %v573 = vmul.f32 %v548, %v562
        %v574 = vmul.f32 %v549, %v562
        %v575 = vmul.f32 %v550, %v562
        %576 = vset.pattern.permute.xlu0 9
        %577 = vperm.xlu0 %576, %v221
        %v578 = vpop.permute.xlu0 %577
        %580 = vset.pattern.permute.xlu0 9
        %581 = vperm.xlu0 %580, %v222
        %v582 = vpop.permute.xlu0 %581
        %584 = vset.pattern.permute.xlu0 9
        %585 = vperm.xlu0 %584, %v223
        %v586 = vpop.permute.xlu0 %585
        %v588 = vmul.f32 %v537, %v578
        %v589 = vmul.f32 %v538, %v578
        %v590 = vmul.f32 %v539, %v578
        %v591 = vmul.f32 %v540, %v578
        %v592 = vmul.f32 %v542, %v582
        %v593 = vmul.f32 %v543, %v582
        %v594 = vmul.f32 %v544, %v582
        %v595 = vmul.f32 %v545, %v582
        %v596 = vmul.f32 %v547, %v586
        %v597 = vmul.f32 %v548, %v586
        %v598 = vmul.f32 %v549, %v586
        %v599 = vmul.f32 %v550, %v586
        %612 = vrot.lane.b32.xlu0 %v588, 127
        %v613 = vpop.permute.xlu0 %612
        %614 = vrot.lane.b32.xlu0 %v589, 127
        %v615 = vpop.permute.xlu0 %614
        %616 = vrot.lane.b32.xlu0 %v590, 127
        %v617 = vpop.permute.xlu0 %616
        %618 = vrot.lane.b32.xlu0 %v591, 127
        %v619 = vpop.permute.xlu0 %618
        %620 = vrot.lane.b32.xlu0 %v592, 127
        %v621 = vpop.permute.xlu0 %620
        %622 = vrot.lane.b32.xlu0 %v593, 127
        %v623 = vpop.permute.xlu0 %622
        %624 = vrot.lane.b32.xlu0 %v594, 127
        %v625 = vpop.permute.xlu0 %624
        %626 = vrot.lane.b32.xlu0 %v595, 127
        %v627 = vpop.permute.xlu0 %626
        %628 = vrot.lane.b32.xlu0 %v596, 127
        %v629 = vpop.permute.xlu0 %628
        %630 = vrot.lane.b32.xlu0 %v597, 127
        %v631 = vpop.permute.xlu0 %630
        %632 = vrot.lane.b32.xlu0 %v598, 127
        %v633 = vpop.permute.xlu0 %632
        %634 = vrot.lane.b32.xlu0 %v599, 127
        %v635 = vpop.permute.xlu0 %634
        %vm636 = vcmask 1039360
        %v637 = vsel %vm636, %v613, %v615
        %v638 = vsel %vm636, %v615, %v617
        %v639 = vsel %vm636, %v617, %v619
        %v640 = vsel %vm636, %v621, %v623
        %v641 = vsel %vm636, %v623, %v625
        %v642 = vsel %vm636, %v625, %v627
        %v643 = vsel %vm636, %v629, %v631
        %v644 = vsel %vm636, %v631, %v633
        %v645 = vsel %vm636, %v633, %v635
        %v658 = vadd.f32 %v564, %v637
        %v659 = vadd.f32 %v565, %v638
        %v660 = vadd.f32 %v566, %v639
        %v661 = vadd.f32 %v567, %v619
        %v662 = vadd.f32 %v568, %v640
        %v663 = vadd.f32 %v569, %v641
        %v664 = vadd.f32 %v570, %v642
        %v665 = vadd.f32 %v571, %v627
        %v666 = vadd.f32 %v572, %v643
        %v667 = vadd.f32 %v573, %v644
        %v668 = vadd.f32 %v574, %v645
        %v669 = vadd.f32 %v575, %v635
        %670 = vset.pattern.permute.xlu0 10
        %671 = vperm.xlu0 %670, %v221
        %v672 = vpop.permute.xlu0 %671
        %674 = vset.pattern.permute.xlu0 10
        %675 = vperm.xlu0 %674, %v222
        %v676 = vpop.permute.xlu0 %675
        %678 = vset.pattern.permute.xlu0 10
        %679 = vperm.xlu0 %678, %v223
        %v680 = vpop.permute.xlu0 %679
        %v682 = vmul.f32 %v537, %v672
        %v683 = vmul.f32 %v538, %v672
        %v684 = vmul.f32 %v539, %v672
        %v685 = vmul.f32 %v540, %v672
        %v686 = vmul.f32 %v542, %v676
        %v687 = vmul.f32 %v543, %v676
        %v688 = vmul.f32 %v544, %v676
        %v689 = vmul.f32 %v545, %v676
        %v690 = vmul.f32 %v547, %v680
        %v691 = vmul.f32 %v548, %v680
        %v692 = vmul.f32 %v549, %v680
        %v693 = vmul.f32 %v550, %v680
        %706 = vrot.lane.b32.xlu0 %v682, 126
        %v707 = vpop.permute.xlu0 %706
        %708 = vrot.lane.b32.xlu0 %v683, 126
        %v709 = vpop.permute.xlu0 %708
        %710 = vrot.lane.b32.xlu0 %v684, 126
        %v711 = vpop.permute.xlu0 %710
        %712 = vrot.lane.b32.xlu0 %v685, 126
        %v713 = vpop.permute.xlu0 %712
        %714 = vrot.lane.b32.xlu0 %v686, 126
        %v715 = vpop.permute.xlu0 %714
        %716 = vrot.lane.b32.xlu0 %v687, 126
        %v717 = vpop.permute.xlu0 %716
        %718 = vrot.lane.b32.xlu0 %v688, 126
        %v719 = vpop.permute.xlu0 %718
        %720 = vrot.lane.b32.xlu0 %v689, 126
        %v721 = vpop.permute.xlu0 %720
        %722 = vrot.lane.b32.xlu0 %v690, 126
        %v723 = vpop.permute.xlu0 %722
        %724 = vrot.lane.b32.xlu0 %v691, 126
        %v725 = vpop.permute.xlu0 %724
        %726 = vrot.lane.b32.xlu0 %v692, 126
        %v727 = vpop.permute.xlu0 %726
        %728 = vrot.lane.b32.xlu0 %v693, 126
        %v729 = vpop.permute.xlu0 %728
        %vm730 = vcmask 1031168
        %v731 = vsel %vm730, %v707, %v709
        %v732 = vsel %vm730, %v709, %v711
        %v733 = vsel %vm730, %v711, %v713
        %v734 = vsel %vm730, %v715, %v717
        %v735 = vsel %vm730, %v717, %v719
        %v736 = vsel %vm730, %v719, %v721
        %v737 = vsel %vm730, %v723, %v725
        %v738 = vsel %vm730, %v725, %v727
        %v739 = vsel %vm730, %v727, %v729
        %v752 = vadd.f32 %v658, %v731
        %v753 = vadd.f32 %v659, %v732
        %v754 = vadd.f32 %v660, %v733
        %v755 = vadd.f32 %v661, %v713
        %v756 = vadd.f32 %v662, %v734
        %v757 = vadd.f32 %v663, %v735
        %v758 = vadd.f32 %v664, %v736
        %v759 = vadd.f32 %v665, %v721
        %v760 = vadd.f32 %v666, %v737
        %v761 = vadd.f32 %v667, %v738
        %v762 = vadd.f32 %v668, %v739
        %v763 = vadd.f32 %v669, %v729
        %764 = vset.pattern.permute.xlu0 11
        %765 = vperm.xlu0 %764, %v221
        %v766 = vpop.permute.xlu0 %765
        %768 = vset.pattern.permute.xlu0 11
        %769 = vperm.xlu0 %768, %v222
        %v770 = vpop.permute.xlu0 %769
        %772 = vset.pattern.permute.xlu0 11
        %773 = vperm.xlu0 %772, %v223
        %v774 = vpop.permute.xlu0 %773
        %v776 = vmul.f32 %v537, %v766
        %v777 = vmul.f32 %v538, %v766
        %v778 = vmul.f32 %v539, %v766
        %v779 = vmul.f32 %v540, %v766
        %v780 = vmul.f32 %v542, %v770
        %v781 = vmul.f32 %v543, %v770
        %v782 = vmul.f32 %v544, %v770
        %v783 = vmul.f32 %v545, %v770
        %v784 = vmul.f32 %v547, %v774
        %v785 = vmul.f32 %v548, %v774
        %v786 = vmul.f32 %v549, %v774
        %v787 = vmul.f32 %v550, %v774
        %800 = vrot.lane.b32.xlu0 %v776, 110
        %v801 = vpop.permute.xlu0 %800
        %802 = vrot.lane.b32.xlu0 %v777, 110
        %v803 = vpop.permute.xlu0 %802
        %804 = vrot.lane.b32.xlu0 %v778, 110
        %v805 = vpop.permute.xlu0 %804
        %806 = vrot.lane.b32.xlu0 %v779, 110
        %v807 = vpop.permute.xlu0 %806
        %808 = vrot.lane.b32.xlu0 %v780, 110
        %v809 = vpop.permute.xlu0 %808
        %810 = vrot.lane.b32.xlu0 %v781, 110
        %v811 = vpop.permute.xlu0 %810
        %812 = vrot.lane.b32.xlu0 %v782, 110
        %v813 = vpop.permute.xlu0 %812
        %814 = vrot.lane.b32.xlu0 %v783, 110
        %v815 = vpop.permute.xlu0 %814
        %816 = vrot.lane.b32.xlu0 %v784, 110
        %v817 = vpop.permute.xlu0 %816
        %818 = vrot.lane.b32.xlu0 %v785, 110
        %v819 = vpop.permute.xlu0 %818
        %820 = vrot.lane.b32.xlu0 %v786, 110
        %v821 = vpop.permute.xlu0 %820
        %822 = vrot.lane.b32.xlu0 %v787, 110
        %v823 = vpop.permute.xlu0 %822
        %vm824 = vcmask 900096
        %v825 = vsel %vm824, %v801, %v803
        %v826 = vsel %vm824, %v803, %v805
        %v827 = vsel %vm824, %v805, %v807
        %v828 = vsel %vm824, %v809, %v811
        %v829 = vsel %vm824, %v811, %v813
        %v830 = vsel %vm824, %v813, %v815
        %v831 = vsel %vm824, %v817, %v819
        %v832 = vsel %vm824, %v819, %v821
        %v833 = vsel %vm824, %v821, %v823
        %v846 = vadd.f32 %v752, %v825
        %v847 = vadd.f32 %v753, %v826
        %v848 = vadd.f32 %v754, %v827
        %v849 = vadd.f32 %v755, %v807
        %v850 = vadd.f32 %v756, %v828
        %v851 = vadd.f32 %v757, %v829
        %v852 = vadd.f32 %v758, %v830
        %v853 = vadd.f32 %v759, %v815
        %v854 = vadd.f32 %v760, %v831
        %v855 = vadd.f32 %v761, %v832
        %v856 = vadd.f32 %v762, %v833
        %v857 = vadd.f32 %v763, %v823
        %858 = vset.pattern.permute.xlu0 12
        %859 = vperm.xlu0 %858, %v221
        %v860 = vpop.permute.xlu0 %859
        %862 = vset.pattern.permute.xlu0 12
        %863 = vperm.xlu0 %862, %v222
        %v864 = vpop.permute.xlu0 %863
        %866 = vset.pattern.permute.xlu0 12
        %867 = vperm.xlu0 %866, %v223
        %v868 = vpop.permute.xlu0 %867
        %v870 = vmul.f32 %v538, %v860
        %v871 = vmul.f32 %v539, %v860
        %v872 = vmul.f32 %v540, %v860
        %v873 = vmul.f32 %v543, %v864
        %v874 = vmul.f32 %v544, %v864
        %v875 = vmul.f32 %v545, %v864
        %v876 = vmul.f32 %v548, %v868
        %v877 = vmul.f32 %v549, %v868
        %v878 = vmul.f32 %v550, %v868
        %888 = vrot.lane.b32.xlu0 %v870, 109
        %v889 = vpop.permute.xlu0 %888
        %890 = vrot.lane.b32.xlu0 %v871, 109
        %v891 = vpop.permute.xlu0 %890
        %892 = vrot.lane.b32.xlu0 %v872, 109
        %v893 = vpop.permute.xlu0 %892
        %894 = vrot.lane.b32.xlu0 %v873, 109
        %v895 = vpop.permute.xlu0 %894
        %896 = vrot.lane.b32.xlu0 %v874, 109
        %v897 = vpop.permute.xlu0 %896
        %898 = vrot.lane.b32.xlu0 %v875, 109
        %v899 = vpop.permute.xlu0 %898
        %900 = vrot.lane.b32.xlu0 %v876, 109
        %v901 = vpop.permute.xlu0 %900
        %902 = vrot.lane.b32.xlu0 %v877, 109
        %v903 = vpop.permute.xlu0 %902
        %904 = vrot.lane.b32.xlu0 %v878, 109
        %v905 = vpop.permute.xlu0 %904
        %vm906 = vcmask 891904
        %v907 = vsel %vm906, %v889, %v891
        %v908 = vsel %vm906, %v891, %v893
        %v909 = vsel %vm906, %v895, %v897
        %v910 = vsel %vm906, %v897, %v899
        %v911 = vsel %vm906, %v901, %v903
        %v912 = vsel %vm906, %v903, %v905
        %v925 = vadd.f32 %v846, %v889
        %v926 = vadd.f32 %v847, %v907
        %v927 = vadd.f32 %v848, %v908
        %v928 = vadd.f32 %v849, %v893
        %v929 = vadd.f32 %v850, %v895
        %v930 = vadd.f32 %v851, %v909
        %v931 = vadd.f32 %v852, %v910
        %v932 = vadd.f32 %v853, %v899
        %v933 = vadd.f32 %v854, %v901
        %v934 = vadd.f32 %v855, %v911
        %v935 = vadd.f32 %v856, %v912
        %v936 = vadd.f32 %v857, %v905
        %937 = vset.pattern.permute.xlu0 13
        %938 = vperm.xlu0 %937, %v221
        %v939 = vpop.permute.xlu0 %938
        %941 = vset.pattern.permute.xlu0 13
        %942 = vperm.xlu0 %941, %v222
        %v943 = vpop.permute.xlu0 %942
        %945 = vset.pattern.permute.xlu0 13
        %946 = vperm.xlu0 %945, %v223
        %v947 = vpop.permute.xlu0 %946
        %v949 = vmul.f32 %v538, %v939
        %v950 = vmul.f32 %v539, %v939
        %v951 = vmul.f32 %v540, %v939
        %v952 = vmul.f32 %v541, %v939
        %v953 = vmul.f32 %v543, %v943
        %v954 = vmul.f32 %v544, %v943
        %v955 = vmul.f32 %v545, %v943
        %v956 = vmul.f32 %v546, %v943
        %v957 = vmul.f32 %v548, %v947
        %v958 = vmul.f32 %v549, %v947
        %v959 = vmul.f32 %v550, %v947
        %v960 = vmul.f32 %v551, %v947
        %973 = vrot.lane.b32.xlu0 %v949, 108
        %v974 = vpop.permute.xlu0 %973
        %975 = vrot.lane.b32.xlu0 %v950, 108
        %v976 = vpop.permute.xlu0 %975
        %977 = vrot.lane.b32.xlu0 %v951, 108
        %v978 = vpop.permute.xlu0 %977
        %979 = vrot.lane.b32.xlu0 %v952, 108
        %v980 = vpop.permute.xlu0 %979
        %981 = vrot.lane.b32.xlu0 %v953, 108
        %v982 = vpop.permute.xlu0 %981
        %983 = vrot.lane.b32.xlu0 %v954, 108
        %v984 = vpop.permute.xlu0 %983
        %985 = vrot.lane.b32.xlu0 %v955, 108
        %v986 = vpop.permute.xlu0 %985
        %987 = vrot.lane.b32.xlu0 %v956, 108
        %v988 = vpop.permute.xlu0 %987
        %989 = vrot.lane.b32.xlu0 %v957, 108
        %v990 = vpop.permute.xlu0 %989
        %991 = vrot.lane.b32.xlu0 %v958, 108
        %v992 = vpop.permute.xlu0 %991
        %993 = vrot.lane.b32.xlu0 %v959, 108
        %v994 = vpop.permute.xlu0 %993
        %995 = vrot.lane.b32.xlu0 %v960, 108
        %v996 = vpop.permute.xlu0 %995
        %vm997 = vcmask 883712
        %v998 = vsel %vm997, %v974, %v976
        %v999 = vsel %vm997, %v976, %v978
        %v1000 = vsel %vm997, %v978, %v980
        %v1001 = vsel %vm997, %v982, %v984
        %v1002 = vsel %vm997, %v984, %v986
        %v1003 = vsel %vm997, %v986, %v988
        %v1004 = vsel %vm997, %v990, %v992
        %v1005 = vsel %vm997, %v992, %v994
        %v1006 = vsel %vm997, %v994, %v996
        %v1019 = vadd.f32 %v925, %v974
        %v1020 = vadd.f32 %v926, %v998
        %v1021 = vadd.f32 %v927, %v999
        %v1022 = vadd.f32 %v928, %v1000
        %v1023 = vadd.f32 %v929, %v982
        %v1024 = vadd.f32 %v930, %v1001
        %v1025 = vadd.f32 %v931, %v1002
        %v1026 = vadd.f32 %v932, %v1003
        %v1027 = vadd.f32 %v933, %v990
        %v1028 = vadd.f32 %v934, %v1004
        %v1029 = vadd.f32 %v935, %v1005
        %v1030 = vadd.f32 %v936, %v1006
        %1031 = vset.pattern.permute.xlu0 14
        %1032 = vperm.xlu0 %1031, %v221
        %v1033 = vpop.permute.xlu0 %1032
        %1035 = vset.pattern.permute.xlu0 14
        %1036 = vperm.xlu0 %1035, %v222
        %v1037 = vpop.permute.xlu0 %1036
        %1039 = vset.pattern.permute.xlu0 14
        %1040 = vperm.xlu0 %1039, %v223
        %v1041 = vpop.permute.xlu0 %1040
        %v1043 = vmul.f32 %v538, %v1033
        %v1044 = vmul.f32 %v539, %v1033
        %v1045 = vmul.f32 %v540, %v1033
        %v1046 = vmul.f32 %v541, %v1033
        %v1047 = vmul.f32 %v543, %v1037
        %v1048 = vmul.f32 %v544, %v1037
        %v1049 = vmul.f32 %v545, %v1037
        %v1050 = vmul.f32 %v546, %v1037
        %v1051 = vmul.f32 %v548, %v1041
        %v1052 = vmul.f32 %v549, %v1041
        %v1053 = vmul.f32 %v550, %v1041
        %v1054 = vmul.f32 %v551, %v1041
        %1067 = vrot.lane.b32.xlu0 %v1043, 92
        %v1068 = vpop.permute.xlu0 %1067
        %1069 = vrot.lane.b32.xlu0 %v1044, 92
        %v1070 = vpop.permute.xlu0 %1069
        %1071 = vrot.lane.b32.xlu0 %v1045, 92
        %v1072 = vpop.permute.xlu0 %1071
        %1073 = vrot.lane.b32.xlu0 %v1046, 92
        %v1074 = vpop.permute.xlu0 %1073
        %1075 = vrot.lane.b32.xlu0 %v1047, 92
        %v1076 = vpop.permute.xlu0 %1075
        %1077 = vrot.lane.b32.xlu0 %v1048, 92
        %v1078 = vpop.permute.xlu0 %1077
        %1079 = vrot.lane.b32.xlu0 %v1049, 92
        %v1080 = vpop.permute.xlu0 %1079
        %1081 = vrot.lane.b32.xlu0 %v1050, 92
        %v1082 = vpop.permute.xlu0 %1081
        %1083 = vrot.lane.b32.xlu0 %v1051, 92
        %v1084 = vpop.permute.xlu0 %1083
        %1085 = vrot.lane.b32.xlu0 %v1052, 92
        %v1086 = vpop.permute.xlu0 %1085
        %1087 = vrot.lane.b32.xlu0 %v1053, 92
        %v1088 = vpop.permute.xlu0 %1087
        %1089 = vrot.lane.b32.xlu0 %v1054, 92
        %v1090 = vpop.permute.xlu0 %1089
        %vm1091 = vcmask 752640
        %v1092 = vsel %vm1091, %v1068, %v1070
        %v1093 = vsel %vm1091, %v1070, %v1072
        %v1094 = vsel %vm1091, %v1072, %v1074
        %v1095 = vsel %vm1091, %v1076, %v1078
        %v1096 = vsel %vm1091, %v1078, %v1080
        %v1097 = vsel %vm1091, %v1080, %v1082
        %v1098 = vsel %vm1091, %v1084, %v1086
        %v1099 = vsel %vm1091, %v1086, %v1088
        %v1100 = vsel %vm1091, %v1088, %v1090
        %v1113 = vadd.f32 %v1019, %v1068
        %v1114 = vadd.f32 %v1020, %v1092
        %v1115 = vadd.f32 %v1021, %v1093
        %v1116 = vadd.f32 %v1022, %v1094
        %v1117 = vadd.f32 %v1023, %v1076
        %v1118 = vadd.f32 %v1024, %v1095
        %v1119 = vadd.f32 %v1025, %v1096
        %v1120 = vadd.f32 %v1026, %v1097
        %v1121 = vadd.f32 %v1027, %v1084
        %v1122 = vadd.f32 %v1028, %v1098
        %v1123 = vadd.f32 %v1029, %v1099
        %v1124 = vadd.f32 %v1030, %v1100
        %1125 = vset.pattern.permute.xlu0 15
        %1126 = vperm.xlu0 %1125, %v221
        %v1127 = vpop.permute.xlu0 %1126
        %1129 = vset.pattern.permute.xlu0 15
        %1130 = vperm.xlu0 %1129, %v222
        %v1131 = vpop.permute.xlu0 %1130
        %1133 = vset.pattern.permute.xlu0 15
        %1134 = vperm.xlu0 %1133, %v223
        %v1135 = vpop.permute.xlu0 %1134
        %v1137 = vmul.f32 %v538, %v1127
        %v1138 = vmul.f32 %v539, %v1127
        %v1139 = vmul.f32 %v540, %v1127
        %v1140 = vmul.f32 %v541, %v1127
        %v1141 = vmul.f32 %v543, %v1131
        %v1142 = vmul.f32 %v544, %v1131
        %v1143 = vmul.f32 %v545, %v1131
        %v1144 = vmul.f32 %v546, %v1131
        %v1145 = vmul.f32 %v548, %v1135
        %v1146 = vmul.f32 %v549, %v1135
        %v1147 = vmul.f32 %v550, %v1135
        %v1148 = vmul.f32 %v551, %v1135
        %1161 = vrot.lane.b32.xlu0 %v1137, 91
        %v1162 = vpop.permute.xlu0 %1161
        %1163 = vrot.lane.b32.xlu0 %v1138, 91
        %v1164 = vpop.permute.xlu0 %1163
        %1165 = vrot.lane.b32.xlu0 %v1139, 91
        %v1166 = vpop.permute.xlu0 %1165
        %1167 = vrot.lane.b32.xlu0 %v1140, 91
        %v1168 = vpop.permute.xlu0 %1167
        %1169 = vrot.lane.b32.xlu0 %v1141, 91
        %v1170 = vpop.permute.xlu0 %1169
        %1171 = vrot.lane.b32.xlu0 %v1142, 91
        %v1172 = vpop.permute.xlu0 %1171
        %1173 = vrot.lane.b32.xlu0 %v1143, 91
        %v1174 = vpop.permute.xlu0 %1173
        %1175 = vrot.lane.b32.xlu0 %v1144, 91
        %v1176 = vpop.permute.xlu0 %1175
        %1177 = vrot.lane.b32.xlu0 %v1145, 91
        %v1178 = vpop.permute.xlu0 %1177
        %1179 = vrot.lane.b32.xlu0 %v1146, 91
        %v1180 = vpop.permute.xlu0 %1179
        %1181 = vrot.lane.b32.xlu0 %v1147, 91
        %v1182 = vpop.permute.xlu0 %1181
        %1183 = vrot.lane.b32.xlu0 %v1148, 91
        %v1184 = vpop.permute.xlu0 %1183
        %vm1185 = vcmask 744448
        %v1186 = vsel %vm1185, %v1162, %v1164
        %v1187 = vsel %vm1185, %v1164, %v1166
        %v1188 = vsel %vm1185, %v1166, %v1168
        %v1189 = vsel %vm1185, %v1170, %v1172
        %v1190 = vsel %vm1185, %v1172, %v1174
        %v1191 = vsel %vm1185, %v1174, %v1176
        %v1192 = vsel %vm1185, %v1178, %v1180
        %v1193 = vsel %vm1185, %v1180, %v1182
        %v1194 = vsel %vm1185, %v1182, %v1184
        %v1207 = vadd.f32 %v1113, %v1162
        %v1208 = vadd.f32 %v1114, %v1186
        %v1209 = vadd.f32 %v1115, %v1187
        %v1210 = vadd.f32 %v1116, %v1188
        %v1211 = vadd.f32 %v1117, %v1170
        %v1212 = vadd.f32 %v1118, %v1189
        %v1213 = vadd.f32 %v1119, %v1190
        %v1214 = vadd.f32 %v1120, %v1191
        %v1215 = vadd.f32 %v1121, %v1178
        %v1216 = vadd.f32 %v1122, %v1192
        %v1217 = vadd.f32 %v1123, %v1193
        %v1218 = vadd.f32 %v1124, %v1194
        %1219 = vset.pattern.permute.xlu0 16
        %1220 = vperm.xlu0 %1219, %v221
        %v1221 = vpop.permute.xlu0 %1220
        %1223 = vset.pattern.permute.xlu0 16
        %1224 = vperm.xlu0 %1223, %v222
        %v1225 = vpop.permute.xlu0 %1224
        %1227 = vset.pattern.permute.xlu0 16
        %1228 = vperm.xlu0 %1227, %v223
        %v1229 = vpop.permute.xlu0 %1228
        %v1231 = vmul.f32 %v538, %v1221
        %v1232 = vmul.f32 %v539, %v1221
        %v1233 = vmul.f32 %v540, %v1221
        %v1234 = vmul.f32 %v541, %v1221
        %v1235 = vmul.f32 %v543, %v1225
        %v1236 = vmul.f32 %v544, %v1225
        %v1237 = vmul.f32 %v545, %v1225
        %v1238 = vmul.f32 %v546, %v1225
        %v1239 = vmul.f32 %v548, %v1229
        %v1240 = vmul.f32 %v549, %v1229
        %v1241 = vmul.f32 %v550, %v1229
        %v1242 = vmul.f32 %v551, %v1229
        %1255 = vrot.lane.b32.xlu0 %v1231, 90
        %v1256 = vpop.permute.xlu0 %1255
        %1257 = vrot.lane.b32.xlu0 %v1232, 90
        %v1258 = vpop.permute.xlu0 %1257
        %1259 = vrot.lane.b32.xlu0 %v1233, 90
        %v1260 = vpop.permute.xlu0 %1259
        %1261 = vrot.lane.b32.xlu0 %v1234, 90
        %v1262 = vpop.permute.xlu0 %1261
        %1263 = vrot.lane.b32.xlu0 %v1235, 90
        %v1264 = vpop.permute.xlu0 %1263
        %1265 = vrot.lane.b32.xlu0 %v1236, 90
        %v1266 = vpop.permute.xlu0 %1265
        %1267 = vrot.lane.b32.xlu0 %v1237, 90
        %v1268 = vpop.permute.xlu0 %1267
        %1269 = vrot.lane.b32.xlu0 %v1238, 90
        %v1270 = vpop.permute.xlu0 %1269
        %1271 = vrot.lane.b32.xlu0 %v1239, 90
        %v1272 = vpop.permute.xlu0 %1271
        %1273 = vrot.lane.b32.xlu0 %v1240, 90
        %v1274 = vpop.permute.xlu0 %1273
        %1275 = vrot.lane.b32.xlu0 %v1241, 90
        %v1276 = vpop.permute.xlu0 %1275
        %1277 = vrot.lane.b32.xlu0 %v1242, 90
        %v1278 = vpop.permute.xlu0 %1277
        %vm1279 = vcmask 736256
        %v1280 = vsel %vm1279, %v1256, %v1258
        %v1281 = vsel %vm1279, %v1258, %v1260
        %v1282 = vsel %vm1279, %v1260, %v1262
        %v1283 = vsel %vm1279, %v1264, %v1266
        %v1284 = vsel %vm1279, %v1266, %v1268
        %v1285 = vsel %vm1279, %v1268, %v1270
        %v1286 = vsel %vm1279, %v1272, %v1274
        %v1287 = vsel %vm1279, %v1274, %v1276
        %v1288 = vsel %vm1279, %v1276, %v1278
        %v1301 = vadd.f32 %v1207, %v1256
        %v1302 = vadd.f32 %v1208, %v1280
        %v1303 = vadd.f32 %v1209, %v1281
        %v1304 = vadd.f32 %v1210, %v1282
        %v1305 = vadd.f32 %v1211, %v1264
        %v1306 = vadd.f32 %v1212, %v1283
        %v1307 = vadd.f32 %v1213, %v1284
        %v1308 = vadd.f32 %v1214, %v1285
        %v1309 = vadd.f32 %v1215, %v1272
        %v1310 = vadd.f32 %v1216, %v1286
        %v1311 = vadd.f32 %v1217, %v1287
        %v1312 = vadd.f32 %v1218, %v1288
        %1313 = vset.pattern.permute.xlu0 17
        %1314 = vperm.xlu0 %1313, %v221
        %v1315 = vpop.permute.xlu0 %1314
        %1317 = vset.pattern.permute.xlu0 17
        %1318 = vperm.xlu0 %1317, %v222
        %v1319 = vpop.permute.xlu0 %1318
        %1321 = vset.pattern.permute.xlu0 17
        %1322 = vperm.xlu0 %1321, %v223
        %v1323 = vpop.permute.xlu0 %1322
        %v1325 = vadd.f32 %v1301, %v1315
        %v1326 = vadd.f32 %v1302, %v1315
        %v1327 = vadd.f32 %v1303, %v1315
        %v1328 = vadd.f32 %v1304, %v1315
        %v1329 = vadd.f32 %v1305, %v1319
        %v1330 = vadd.f32 %v1306, %v1319
        %v1331 = vadd.f32 %v1307, %v1319
        %v1332 = vadd.f32 %v1308, %v1319
        %v1333 = vadd.f32 %v1309, %v1323
        %v1334 = vadd.f32 %v1310, %v1323
        %v1335 = vadd.f32 %v1311, %v1323
        %v1336 = vadd.f32 %v1312, %v1323
        %v1337 = vmax.f32 %v1325, 0.0
        %v1338 = vmax.f32 %v1326, 0.0
        %v1339 = vmax.f32 %v1327, 0.0
        %v1340 = vmax.f32 %v1328, 0.0
        %v1341 = vmax.f32 %v1329, 0.0
        %v1342 = vmax.f32 %v1330, 0.0
        %v1343 = vmax.f32 %v1331, 0.0
        %v1344 = vmax.f32 %v1332, 0.0
        %v1345 = vmax.f32 %v1333, 0.0
        %v1346 = vmax.f32 %v1334, 0.0
        %v1347 = vmax.f32 %v1335, 0.0
        %v1348 = vmax.f32 %v1336, 0.0
        %v1349 = vmin.f32 %v1337, 6.0
        %v1350 = vmin.f32 %v1338, 6.0
        %v1351 = vmin.f32 %v1339, 6.0
        %v1352 = vmin.f32 %v1340, 6.0
        %v1353 = vmin.f32 %v1341, 6.0
        %v1354 = vmin.f32 %v1342, 6.0
        %v1355 = vmin.f32 %v1343, 6.0
        %v1356 = vmin.f32 %v1344, 6.0
        %v1357 = vmin.f32 %v1345, 6.0
        %v1358 = vmin.f32 %v1346, 6.0
        %v1359 = vmin.f32 %v1347, 6.0
        %v1360 = vmin.f32 %v1348, 6.0
        %v1361 = vld [vmem:[#allocation7] sm:$0xff]
        %1363 = vset.pattern.permute.xlu0 24
        %1364 = vperm.xlu0 %1363, %v1361
        %v1365 = vpop.permute.xlu0 %1364
        %1379 = vrot.lane.b32.xlu0 %v1349, 19
        %v1380 = vpop.permute.xlu0 %1379
        %1381 = vrot.lane.b32.xlu0 %v1350, 19
        %v1382 = vpop.permute.xlu0 %1381
        %1383 = vrot.lane.b32.xlu0 %v1351, 19
        %v1384 = vpop.permute.xlu0 %1383
        %1385 = vrot.lane.b32.xlu0 %v1352, 19
        %v1386 = vpop.permute.xlu0 %1385
        %1387 = vrot.lane.b32.xlu0 %v1353, 19
        %v1388 = vpop.permute.xlu0 %1387
        %1389 = vrot.lane.b32.xlu0 %v1354, 19
        %v1390 = vpop.permute.xlu0 %1389
        %1391 = vrot.lane.b32.xlu0 %v1355, 19
        %v1392 = vpop.permute.xlu0 %1391
        %1393 = vrot.lane.b32.xlu0 %v1356, 19
        %v1394 = vpop.permute.xlu0 %1393
        %1395 = vrot.lane.b32.xlu0 %v1357, 19
        %v1396 = vpop.permute.xlu0 %1395
        %1397 = vrot.lane.b32.xlu0 %v1358, 19
        %v1398 = vpop.permute.xlu0 %1397
        %1399 = vrot.lane.b32.xlu0 %v1359, 19
        %v1400 = vpop.permute.xlu0 %1399
        %1401 = vrot.lane.b32.xlu0 %v1360, 19
        %v1402 = vpop.permute.xlu0 %1401
        %vm1403 = vcmask 154624
        %v1404 = vsel %vm1403, %v1380, %v1382
        %v1405 = vsel %vm1403, %v1382, %v1384
        %v1406 = vsel %vm1403, %v1384, %v1386
        %v1407 = vsel %vm1403, %v1388, %v1390
        %v1408 = vsel %vm1403, %v1390, %v1392
        %v1409 = vsel %vm1403, %v1392, %v1394
        %v1410 = vsel %vm1403, %v1396, %v1398
        %v1411 = vsel %vm1403, %v1398, %v1400
        %v1412 = vsel %vm1403, %v1400, %v1402
        %vm1422 = vcmask 195584
        %v1423 = vsel %vm1422, %v1361, 0
        %1425 = vmatprep.subr.mxu0 %v1405
        %1426 = vmatpush1.msra.mxu0 %v1404
        %1427 = vmatprep.subr.mxu0 %v1408
        %1428 = vmatpush1.msra.mxu0 %v1407
        %1429 = vmatprep.subr.mxu0 %v1411
        %1430 = vmatpush1.msra.mxu0 %v1410
        %1431 = vmatprep.subr.mxu0 0.0
        %1432 = vmatpush1.msra.mxu0 0.0
        %1433 = vmatprep.subr.mxu0 0.0
        %1434 = vmatpush1.msra.mxu0 0.0
        %1435 = vmatprep.subr.mxu0 0.0
        %1436 = vmatpush1.msra.mxu0 0.0
        %1437 = vmatprep.subr.mxu0 0.0
        %1438 = vmatpush1.msra.mxu0 0.0
        %1439 = vmatprep.subr.mxu0 0.0
        %1440 = vmatpush1.msra.mxu0 0.0
        %1441 = vmatprep.subr.mxu0 0.0
        %1442 = vmatpush1.msra.mxu0 0.0
        %1443 = vmatprep.subr.mxu0 0.0
        %1444 = vmatpush1.msra.mxu0 0.0
        %1445 = vmatprep.subr.mxu0 0.0
        %1446 = vmatpush1.msra.mxu0 0.0
        %1447 = vmatprep.subr.mxu0 0.0
        %1448 = vmatpush1.msra.mxu0 0.0
        %1449 = vmatprep.subr.mxu0 0.0
        %1450 = vmatpush1.msra.mxu0 0.0
        %1451 = vmatprep.subr.mxu0 0.0
        %1452 = vmatpush1.msra.mxu0 0.0
        %1453 = vmatprep.subr.mxu0 0.0
        %1454 = vmatpush1.msra.mxu0 0.0
        %1455 = vmatprep.subr.mxu0 0.0
        %1456 = vmatpush1.msra.mxu0 0.0
        %1457 = vmatprep.subr.mxu0 0.0
        %1458 = vmatpush1.msra.mxu0 0.0
        %1459 = vmatprep.subr.mxu0 0.0
        %1460 = vmatpush1.msra.mxu0 0.0
        %1461 = vmatprep.subr.mxu0 0.0
        %1462 = vmatpush1.msra.mxu0 0.0
        %1463 = vmatprep.subr.mxu0 0.0
        %1464 = vmatpush1.msra.mxu0 0.0
        %1465 = vmatprep.subr.mxu0 0.0
        %1466 = vmatpush1.msra.mxu0 0.0
        %1467 = vmatprep.subr.mxu0 0.0
        %1468 = vmatpush1.msra.mxu0 0.0
        %1469 = vmatprep.subr.mxu0 0.0
        %1470 = vmatpush1.msra.mxu0 0.0
        %1471 = vmatprep.subr.mxu0 0.0
        %1472 = vmatpush1.msra.mxu0 0.0
        %1473 = vmatprep.subr.mxu0 0.0
        %1474 = vmatpush1.msra.mxu0 0.0
        %1475 = vmatprep.subr.mxu0 0.0
        %1476 = vmatpush1.msra.mxu0 0.0
        %1477 = vmatprep.subr.mxu0 0.0
        %1478 = vmatpush1.msra.mxu0 0.0
        %1479 = vmatprep.subr.mxu0 0.0
        %1480 = vmatpush1.msra.mxu0 0.0
        %1481 = vmatprep.subr.mxu0 0.0
        %1482 = vmatpush1.msra.mxu0 0.0
        %1483 = vmatprep.subr.mxu0 0.0
        %1484 = vmatpush1.msra.mxu0 0.0
        %1485 = vmatprep.subr.mxu0 0.0
        %1486 = vmatpush1.msra.mxu0 0.0
        %1487 = vmatprep.subr.mxu0 0.0
        %1488 = vmatpush1.msra.mxu0 0.0
        %1489 = vmatprep.mubr.f32.mxu0 0.0
        %1490 = vmatmul.mubr.f32.gmra.mrb[0].mxu0 %v1423
        %v1491 = vpop.f32.mrb[0].mxu0
        %v1492 = vadd.f32 %v1365, %v1491
        %v1493 = vpop.f32.mrb[0].mxu0
        %v1494 = vadd.f32 %v1365, %v1493
        %1495 = vdwg.mxu0
        %1496 = vmatprep.subr.mxu0 0.0
        %1497 = vmatpush1.msra.mxu0 %v1406
        %1498 = vmatprep.subr.mxu0 0.0
        %1499 = vmatpush1.msra.mxu0 %v1409
        %1500 = vmatprep.subr.mxu0 0.0
        %1501 = vmatpush1.msra.mxu0 %v1412
        %1502 = vmatprep.subr.mxu0 0.0
        %1503 = vmatpush1.msra.mxu0 0.0
        %1504 = vmatprep.subr.mxu0 0.0
        %1505 = vmatpush1.msra.mxu0 0.0
        %1506 = vmatprep.subr.mxu0 0.0
        %1507 = vmatpush1.msra.mxu0 0.0
        %1508 = vmatprep.subr.mxu0 0.0
        %1509 = vmatpush1.msra.mxu0 0.0
        %1510 = vmatprep.subr.mxu0 0.0
        %1511 = vmatpush1.msra.mxu0 0.0
        %1512 = vmatprep.subr.mxu0 0.0
        %1513 = vmatpush1.msra.mxu0 0.0
        %1514 = vmatprep.subr.mxu0 0.0
        %1515 = vmatpush1.msra.mxu0 0.0
        %1516 = vmatprep.subr.mxu0 0.0
        %1517 = vmatpush1.msra.mxu0 0.0
        %1518 = vmatprep.subr.mxu0 0.0
        %1519 = vmatpush1.msra.mxu0 0.0
        %1520 = vmatprep.subr.mxu0 0.0
        %1521 = vmatpush1.msra.mxu0 0.0
        %1522 = vmatprep.subr.mxu0 0.0
        %1523 = vmatpush1.msra.mxu0 0.0
        %1524 = vmatprep.subr.mxu0 0.0
        %1525 = vmatpush1.msra.mxu0 0.0
        %1526 = vmatprep.subr.mxu0 0.0
        %1527 = vmatpush1.msra.mxu0 0.0
        %1528 = vmatprep.subr.mxu0 0.0
        %1529 = vmatpush1.msra.mxu0 0.0
        %1530 = vmatprep.subr.mxu0 0.0
        %1531 = vmatpush1.msra.mxu0 0.0
        %1532 = vmatprep.subr.mxu0 0.0
        %1533 = vmatpush1.msra.mxu0 0.0
        %1534 = vmatprep.subr.mxu0 0.0
        %1535 = vmatpush1.msra.mxu0 0.0
        %1536 = vmatprep.subr.mxu0 0.0
        %1537 = vmatpush1.msra.mxu0 0.0
        %1538 = vmatprep.subr.mxu0 0.0
        %1539 = vmatpush1.msra.mxu0 0.0
        %1540 = vmatprep.subr.mxu0 0.0
        %1541 = vmatpush1.msra.mxu0 0.0
        %1542 = vmatprep.subr.mxu0 0.0
        %1543 = vmatpush1.msra.mxu0 0.0
        %1544 = vmatprep.subr.mxu0 0.0
        %1545 = vmatpush1.msra.mxu0 0.0
        %1546 = vmatprep.subr.mxu0 0.0
        %1547 = vmatpush1.msra.mxu0 0.0
        %1548 = vmatprep.subr.mxu0 0.0
        %1549 = vmatpush1.msra.mxu0 0.0
        %1550 = vmatprep.subr.mxu0 0.0
        %1551 = vmatpush1.msra.mxu0 0.0
        %1552 = vmatprep.subr.mxu0 0.0
        %1553 = vmatpush1.msra.mxu0 0.0
        %1554 = vmatprep.subr.mxu0 0.0
        %1555 = vmatpush1.msra.mxu0 0.0
        %1556 = vmatprep.subr.mxu0 0.0
        %1557 = vmatpush1.msra.mxu0 0.0
        %1558 = vmatprep.subr.mxu0 0.0
        %1559 = vmatpush1.msra.mxu0 0.0
        %1560 = vmatprep.mubr.f32.mxu0 0.0
        %1561 = vmatmul.mubr.f32.gmra.mrb[0].mxu0 %v1423
        %v1562 = vpop.f32.mrb[0].mxu0
        %v1563 = vadd.f32 %v1365, %v1562
        %v1564 = vpop.f32.mrb[0].mxu0
        %1565 = vdwg.mxu0
        %v1566 = vadd.f32 %v1492, %v217
        %v1567 = vadd.f32 %v1494, %v218
        %v1568 = vadd.f32 %v1563, %v219
        %1569 = vst [vmem:[%s213] sm:$0xff] %v1566
        %1570 = vst [vmem:[%s213 + $0x8] sm:$0xff] %v1567
        %1571 = vst [vmem:[%s213 + $0x10] sm:$0xff] %v1568
        %s1572 = sand.u32 %s97, 1
        %s1573 = scalar_lea.sflag [#allocation4], %s1572
        %s1574 = sand.u32 %s97, 1
        %s1575 = smul.addr %s1574, 24
        %s1576 = scalar_lea.vmem [#allocation8], %s1575
        // Predicated region
        $region45: #{tpu_custom_call.1} parent=31 // pred_check
          %p1577 = pneg %p107
        $region46: #{tpu_custom_call.1} parent=31 // pred_check_branch
          %1579 = sbr.rel (%p1577) target = $region48
        $region47: #{tpu_custom_call.1} parent=31 // pred_region
          %s1580 = smul.u32 3, %s21
          %s1582 = ssub.s32 384, 384
          %1583 = vsyncadd %s1573, %s1582
          %s1584 = smul.addr %s1580, 128
          %s1585 = scalar_lea.hbm %s3, %s1584
          %s1587 = sshll.u32 %s1576, 4
          %s1588 = int_to_ptr.vmem [resolvable:$true] %s1587
          %1590 = dma.vmem_to_hbm [thread:$0]  %s1588, 384, %s1585, %s1573
        $region48: #{tpu_custom_call.1} parent=31 // pred_fallthru
          _
      $region32: #{tpu_custom_call.1} parent=5 // pred_fallthru
        _
      %p1591 = scmp.le.s32.totalorder 2, %s16
      // Predicated region
      $region49: #{tpu_custom_call.1} parent=5 // pred_check
        %p1592 = pneg %p1591
      $region50: #{tpu_custom_call.1} parent=5 // pred_check_branch
        %1594 = sbr.rel (%p1592) target = $region52
      $region51: #{tpu_custom_call.1} parent=5 // pred_region
        %s1595 = ssub.s32 %s16, 2
        // Predicated region
        $region53: #{tpu_custom_call.1} parent=51 // pred_check
          %p1596 = pneg %p113
        $region54: #{tpu_custom_call.1} parent=51 // pred_check_branch
          %1598 = sbr.rel (%p1596) target = $region56
        $region55: #{tpu_custom_call.1} parent=51 // pred_region
          %s1599 = sand.u32 %s98, 1
          %s1600 = scalar_lea.sflag [#allocation4], %s1599
          %s1601 = sand.u32 %s98, 1
          %s1602 = smul.addr %s1601, 24
          %s1603 = scalar_lea.vmem [#allocation8], %s1602
          %1604 = dma.done %s1600, 384
        $region56: #{tpu_custom_call.1} parent=51 // pred_fallthru
          _
      $region52: #{tpu_custom_call.1} parent=5 // pred_fallthru
        _
    $region6: #{tpu_custom_call.1} parent=1 // loop_footer
      %s20 = sadd.s32 1, %s16
    $region7: #{tpu_custom_call.1} parent=1 // loop_footer_branch
      %15 = sbr.rel target = $region3
    $region8: #{tpu_custom_call.1} parent=1 // loop_exit
      _
    %1605 = vsyncpa [#allocation3], 1
    %s1606 = scalar_lea.sflag [#allocation3], 1
    %1607 = vsyncpa %s1606, 1
    %1608 = vsyncpa [#allocation6], 1
    %1609 = vsyncpa [#allocation4], 1
    %s1610 = scalar_lea.sflag [#allocation4], 1
    %1611 = vsyncpa %s1610, 1

</llo_original>
